<compile_context>
chip_gen: v7x
topology: tpu7x:2x2x1
jax: 0.10.0
libtpu: 0.0.40
codegen_flags: <defaults>
</compile_context>

<pallas_src>
import functools

import jax
import jax.numpy as jnp
import numpy as np
from jax.experimental import pallas as pl
from jax.experimental.pallas import tpu as pltpu

# keep host-side fold / reference matmuls in true f32 so they match the kernel
jax.config.update("jax_default_matmul_precision", "highest")

# ----------------------------- problem sizes --------------------------------
N = 8          # batch (number of preference pairs)
N_STATE = 16
N_ACTION = 8
N_LAYER = 2    # hidden layers in rew_mdl
SIZE = 32      # encoder / hidden width
LATENT = 4     # latent_dim

F_TOTAL = N_STATE + N_ACTION + LATENT + 1        # fused feature axis (+1 bias lane)
assert F_TOTAL <= SIZE, "fused feature table is padded to SIZE columns"


# ------------------------ packed parameter layout ----------------------------
def _param_layout(size, n_layer):
    """Row offsets inside the packed (rows, SIZE) f32 buffer (one input DMA)."""
    offs = {}
    cur = 0
    offs["t_fold"] = cur; cur += size            # (size, size) folded layer-1 table, transposed
    for i in range(2, n_layer + 1):
        offs[f"w{i}"] = cur; cur += size         # (size, size) hidden weights, (out, in)
    offs["bcol"] = cur; cur += size              # col i-2 = b_i column, col n_layer-1 = w_out column
    offs["rowblk"] = cur; cur += 8               # row 0 = softmax(latent_logits) in lanes [0, LATENT)
    return offs, cur


_OFFS, _PACK_ROWS = _param_layout(SIZE, N_LAYER)


# ------------------------------- kernel -------------------------------------
def _joint_likelihood_kernel(offs, n, size, n_state, n_action, latent, n_layer,
                             idx_ref, prm_ref, prob_n_ref, prob_nl_ref):
    f32 = jnp.float32
    m = 4 * latent * n               # MLP batch columns, ordered (combo, latent, pair)
    half = 2 * latent * n
    qn = latent * n

    def block(name):
        s = offs[name]
        return prm_ref[s:s + size, :]

    # ---- fused one-hot over (state | action | latent | bias) feature axis ----
    s_feat = idx_ref[0:1, :]                     # (1, m) absolute state feature
    a_feat = idx_ref[1:2, :]                     # (1, m) action feature, pre-offset by n_state
    u_feat = idx_ref[2:3, :]                     # (1, m) latent feature, pre-offset (static column)
    f_iota = jax.lax.broadcasted_iota(jnp.int32, (size, m), 0)
    bias_f = n_state + n_action + latent         # always-on bias feature lane
    hit = (f_iota == s_feat) | (f_iota == a_feat) | (f_iota == u_feat) | (f_iota == bias_f)
    oh = jnp.where(hit, jnp.float32(1.0), jnp.float32(0.0))          # (size, m)

    # ---- MLP, transposed: activations are (size, m), batch on the lane axis ----
    h = jnp.tanh(jnp.dot(block("t_fold"), oh, preferred_element_type=f32))
    bcol = block("bcol")
    for i in range(2, n_layer + 1):
        b_i = bcol[:, i - 2:i - 1]                                    # (size, 1)
        h = jnp.tanh(jnp.dot(block(f"w{i}"), h, preferred_element_type=f32) + b_i)

    # ---- output layer on the MXU; b_out cancels in rew(a2) - rew(a1) ----
    wout_col = bcol[:, n_layer - 1:n_layer]                           # (size, 1)
    r_col = jnp.dot(h.T, wout_col, preferred_element_type=f32)        # (m, 1), batch on sublanes

    d = r_col[half:m, :] - r_col[0:half, :]       # (half, 1): rows [left(q), right(q)], q = u*n+i
    prob = jax.nn.sigmoid(d)
    pair = prob[0:qn, :] * prob[qn:half, :]       # (qn, 1): p_l * p_r per (u, i)

    cols = [pair[u * n:(u + 1) * n, :] for u in range(latent)]        # 8-aligned sublane slices
    prob_nl = jnp.concatenate(cols, axis=1)                           # (n, latent)
    lat = prm_ref[offs["rowblk"]:offs["rowblk"] + 1, 0:latent]        # (1, latent) softmax(logits)
    prob_nl_ref[...] = prob_nl
    prob_n_ref[...] = jnp.sum(prob_nl * lat, axis=1, keepdims=True)   # (n, 1)


# ------------------------------ wrapper --------------------------------------
def _static_latent_row(n, latent, n_state, n_action):
    """Static per-column latent feature index (compile-time numpy constant)."""
    u = np.tile(np.repeat(np.arange(latent, dtype=np.int32), n), 4)
    return u + np.int32(n_state + n_action)


@jax.jit
def forward(packed, states_l, actions_1_l, actions_2_l,
            states_r, actions_1_r, actions_2_r):
    """Returns (prob_n [n,1], prob_nl [n, latent_dim]) like the torch module."""
    n = states_l.shape[0]
    i32 = jnp.int32

    def rep(v):                                   # (n,) -> (latent*n,), ordering u*n + i
        return jnp.tile(v.astype(i32), LATENT)

    # columns ordered (combo, latent, pair); combos = [(l,a1),(r,a1),(l,a2),(r,a2)]
    s_row = jnp.concatenate([rep(states_l), rep(states_r), rep(states_l), rep(states_r)])
    a_row = jnp.concatenate([rep(actions_1_l), rep(actions_1_r),
                             rep(actions_2_l), rep(actions_2_r)]) + N_STATE
    u_row = jnp.asarray(_static_latent_row(n, LATENT, N_STATE, N_ACTION))
    idx = jnp.stack([s_row, a_row, u_row])        # (3, 4*LATENT*n) int32, batch lane-dense

    kernel = functools.partial(_joint_likelihood_kernel, _OFFS, n, SIZE,
                               N_STATE, N_ACTION, LATENT, N_LAYER)
    prob_n, prob_nl = pl.pallas_call(
        kernel,
        out_shape=(jax.ShapeDtypeStruct((n, 1), jnp.float32),
                   jax.ShapeDtypeStruct((n, LATENT), jnp.float32)),
        in_specs=[pl.BlockSpec(memory_space=pltpu.MemorySpace.VMEM),
                  pl.BlockSpec(memory_space=pltpu.MemorySpace.VMEM)],
        out_specs=(pl.BlockSpec(memory_space=pltpu.MemorySpace.VMEM),
                   pl.BlockSpec(memory_space=pltpu.MemorySpace.VMEM)),
    )(idx, packed)
    return prob_n, prob_nl


# --------------------------- parameter init / pack ---------------------------
def _linear(key, in_f, out_f):
    """nn.Linear-style init, stored as (W^T [in,out], b [1,out])."""
    kw, kb = jax.random.split(key)
    bound = 1.0 / np.sqrt(in_f)
    w = jax.random.uniform(kw, (in_f, out_f), jnp.float32, -bound, bound)
    b = jax.random.uniform(kb, (1, out_f), jnp.float32, -bound, bound)
    return w, b


def pack_params(params):
    """Fold encoders into layer 1, transpose weights to (out,in), pack biases as
    columns and softmax(logits) as a row -> one (rows, SIZE) f32 buffer."""
    w1, b1 = params["mlp"][0]                                  # (3*SIZE, SIZE), (1, SIZE)
    w1_s, w1_a, w1_u = w1[0:SIZE], w1[SIZE:2 * SIZE], w1[2 * SIZE:3 * SIZE]
    t_s = params["ws"] @ w1_s                                  # (N_STATE, SIZE)
    t_a = params["wa"] @ w1_a                                  # (N_ACTION, SIZE)
    t_u = params["wu"] @ w1_u                                  # (LATENT, SIZE)
    c0 = params["bs"] @ w1_s + params["ba"] @ w1_a + params["bu"] @ w1_u + b1
    pad = jnp.zeros((SIZE - F_TOTAL, SIZE), jnp.float32)
    t_fold = jnp.concatenate([t_s, t_a, t_u, c0, pad], axis=0).T      # (SIZE, SIZE)

    buf = jnp.zeros((_PACK_ROWS, SIZE), jnp.float32)
    buf = buf.at[_OFFS["t_fold"]:_OFFS["t_fold"] + SIZE, :].set(t_fold)

    bcol = jnp.zeros((SIZE, SIZE), jnp.float32)
    for i in range(2, N_LAYER + 1):
        w, b = params["mlp"][i - 1]
        buf = buf.at[_OFFS[f"w{i}"]:_OFFS[f"w{i}"] + SIZE, :].set(w.T)   # (out, in)
        bcol = bcol.at[:, i - 2].set(b.reshape(-1))
    w_out, _b_out = params["mlp"][-1]            # b_out cancels in the reward difference
    bcol = bcol.at[:, N_LAYER - 1].set(w_out.reshape(-1))
    buf = buf.at[_OFFS["bcol"]:_OFFS["bcol"] + SIZE, :].set(bcol)

    rowblk = jnp.zeros((8, SIZE), jnp.float32)
    rowblk = rowblk.at[0, 0:LATENT].set(jax.nn.softmax(params["logits"][0]))
    buf = buf.at[_OFFS["rowblk"]:_OFFS["rowblk"] + 8, :].set(rowblk)
    return buf


def init_params(key):
    keys = jax.random.split(key, 4 + N_LAYER)
    ws, bs = _linear(keys[0], N_STATE, SIZE)
    wa, ba = _linear(keys[1], N_ACTION, SIZE)
    wu, bu = _linear(keys[2], LATENT, SIZE)
    mlp = []
    in_f = 3 * SIZE
    for i in range(N_LAYER):
        mlp.append(_linear(keys[3 + i], in_f, SIZE))
        in_f = SIZE
    mlp.append(_linear(keys[3 + N_LAYER], in_f, 1))
    logits = jnp.zeros((1, LATENT), jnp.float32)   # nn.Parameter(torch.zeros(latent_dim))
    params = dict(ws=ws, bs=bs, wa=wa, ba=ba, wu=wu, bu=bu, logits=logits, mlp=mlp)
    params["packed"] = pack_params(params)         # packed once, at init time
    return params


# ---------------------------- pure-JAX reference ------------------------------
def reference(params, states_l, actions_1_l, actions_2_l,
              states_r, actions_1_r, actions_2_r):
    oh = lambda idx, k: jax.nn.one_hot(idx, k, dtype=jnp.float32)
    lin = lambda x, w, b: x @ w + b

    def mlp(x):
        h = x
        for w, b in params["mlp"][:-1]:
            h = jnp.tanh(h @ w + b)
        w, b = params["mlp"][-1]
        return h @ w + b

    sl_e = lin(oh(states_l, N_STATE), params["ws"], params["bs"])
    a1l_e = lin(oh(actions_1_l, N_ACTION), params["wa"], params["ba"])
    a2l_e = lin(oh(actions_2_l, N_ACTION), params["wa"], params["ba"])
    sr_e = lin(oh(states_r, N_STATE), params["ws"], params["bs"])
    a1r_e = lin(oh(actions_1_r, N_ACTION), params["wa"], params["ba"])
    a2r_e = lin(oh(actions_2_r, N_ACTION), params["wa"], params["ba"])

    n = states_l.shape[0]
    eye = jnp.eye(LATENT, dtype=jnp.float32)
    cols = []
    for u in range(LATENT):
        u_e = jnp.broadcast_to(lin(eye[u:u + 1], params["wu"], params["bu"]), (n, SIZE))
        r1l = mlp(jnp.concatenate([sl_e, a1l_e, u_e], axis=1))
        r2l = mlp(jnp.concatenate([sl_e, a2l_e, u_e], axis=1))
        p_l = jax.nn.sigmoid(r2l - r1l)
        r1r = mlp(jnp.concatenate([sr_e, a1r_e, u_e], axis=1))
        r2r = mlp(jnp.concatenate([sr_e, a2r_e, u_e], axis=1))
        p_r = jax.nn.sigmoid(r2r - r1r)
        cols.append(p_l * p_r)
    prob_nl = jnp.concatenate(cols, axis=1)
    latent_probs = jax.nn.softmax(params["logits"][0])
    prob_n = prob_nl @ latent_probs.reshape(-1, 1)
    return prob_n, prob_nl


# --------------------------------- main ---------------------------------------
if __name__ == "__main__":
    key = jax.random.PRNGKey(0)
    k_param, k_sl, k_a1l, k_a2l, k_sr, k_a1r, k_a2r = jax.random.split(key, 7)

    params = init_params(k_param)

    states_l = jax.random.randint(k_sl, (N,), 0, N_STATE)
    actions_1_l = jax.random.randint(k_a1l, (N,), 0, N_ACTION)
    actions_2_l = jax.random.randint(k_a2l, (N,), 0, N_ACTION)
    states_r = jax.random.randint(k_sr, (N,), 0, N_STATE)
    actions_1_r = jax.random.randint(k_a1r, (N,), 0, N_ACTION)
    actions_2_r = jax.random.randint(k_a2r, (N,), 0, N_ACTION)

    prob_n, prob_nl = forward(params["packed"], states_l, actions_1_l, actions_2_l,
                              states_r, actions_1_r, actions_2_r)
    jax.block_until_ready((prob_n, prob_nl))

    ref_n, ref_nl = reference(params, states_l, actions_1_l, actions_2_l,
                              states_r, actions_1_r, actions_2_r)
    np.testing.assert_allclose(np.asarray(prob_nl), np.asarray(ref_nl),
                               rtol=5e-4, atol=5e-5)
    np.testing.assert_allclose(np.asarray(prob_n), np.asarray(ref_n),
                               rtol=5e-4, atol=5e-5)

    assert prob_n.shape == (N, 1) and prob_nl.shape == (N, LATENT)
    # TODO(synk): calc_latent_disc_loss (auxiliary loss, not part of forward) is not implemented.
    print("KERNEL_OK")
</pallas_src>

<mosaic_0001>
module attributes {stable_mosaic.version = 11 : i64} {
  func.func @_joint_likelihood_kernel(%arg0: memref<3x128xi32, #tpu.memory_space<vmem>>, %arg1: memref<104x32xf32, #tpu.memory_space<vmem>>, %arg2: memref<8x1xf32, #tpu.memory_space<vmem>>, %arg3: memref<8x4xf32, #tpu.memory_space<vmem>>) attributes {dimension_semantics = [], scalar_prefetch = 0 : i64, scratch_operands = 0 : i64, tpu.core_type = #tpu.core_type<tc>} {
    %c0 = arith.constant 0 : index
    %c0_0 = arith.constant 0 : index
    %0 = vector.load %arg0[%c0, %c0_0] : memref<3x128xi32, #tpu.memory_space<vmem>>, vector<1x128xi32>
    %c1 = arith.constant 1 : index
    %c0_1 = arith.constant 0 : index
    %1 = vector.load %arg0[%c1, %c0_1] : memref<3x128xi32, #tpu.memory_space<vmem>>, vector<1x128xi32>
    %c2 = arith.constant 2 : index
    %c0_2 = arith.constant 0 : index
    %2 = vector.load %arg0[%c2, %c0_2] : memref<3x128xi32, #tpu.memory_space<vmem>>, vector<1x128xi32>
    %3 = tpu.iota {dimensions = array<i32: 0>} : vector<32x128xi32>
    %4 = vector.broadcast %0 : vector<1x128xi32> to vector<32x128xi32>
    %5 = arith.cmpi eq, %3, %4 : vector<32x128xi32>
    %6 = vector.broadcast %1 : vector<1x128xi32> to vector<32x128xi32>
    %7 = arith.cmpi eq, %3, %6 : vector<32x128xi32>
    %8 = arith.ori %5, %7 : vector<32x128xi1>
    %9 = vector.broadcast %2 : vector<1x128xi32> to vector<32x128xi32>
    %10 = arith.cmpi eq, %3, %9 : vector<32x128xi32>
    %11 = arith.ori %8, %10 : vector<32x128xi1>
    %c28_i32 = arith.constant 28 : i32
    %12 = vector.broadcast %c28_i32 : i32 to vector<32x128xi32>
    %13 = arith.cmpi eq, %3, %12 : vector<32x128xi32>
    %14 = arith.ori %11, %13 : vector<32x128xi1>
    %cst = arith.constant 1.000000e+00 : f32
    %cst_3 = arith.constant 0.000000e+00 : f32
    %15 = vector.broadcast %cst : f32 to vector<32x128xf32>
    %16 = vector.broadcast %cst_3 : f32 to vector<32x128xf32>
    %17 = arith.select %14, %15, %16 : vector<32x128xi1>, vector<32x128xf32>
    %c0_4 = arith.constant 0 : index
    %c0_5 = arith.constant 0 : index
    %18 = vector.load %arg1[%c0_4, %c0_5] : memref<104x32xf32, #tpu.memory_space<vmem>>, vector<32x32xf32>
    %cst_6 = arith.constant dense<0.000000e+00> : vector<32x128xf32>
    %19 = tpu.matmul %18, %17, %cst_6 {dimension_numbers = #tpu.dot_dimension_numbers<[1], [0], [0], [1], [0, 0, 1, 1], [], []>, precision = #tpu.contract_precision<fp32>} : vector<32x32xf32>, vector<32x128xf32>, vector<32x128xf32> -> vector<32x128xf32>
    %20 = math.tanh %19 : vector<32x128xf32>
    %c64 = arith.constant 64 : index
    %c0_7 = arith.constant 0 : index
    %21 = vector.load %arg1[%c64, %c0_7] : memref<104x32xf32, #tpu.memory_space<vmem>>, vector<32x32xf32>
    %22 = vector.extract_strided_slice %21 {offsets = [0, 0], sizes = [32, 1], strides = [1, 1]} : vector<32x32xf32> to vector<32x1xf32>
    %c32 = arith.constant 32 : index
    %c0_8 = arith.constant 0 : index
    %23 = vector.load %arg1[%c32, %c0_8] : memref<104x32xf32, #tpu.memory_space<vmem>>, vector<32x32xf32>
    %cst_9 = arith.constant dense<0.000000e+00> : vector<32x128xf32>
    %24 = tpu.matmul %23, %20, %cst_9 {dimension_numbers = #tpu.dot_dimension_numbers<[1], [0], [0], [1], [0, 0, 1, 1], [], []>, precision = #tpu.contract_precision<fp32>} : vector<32x32xf32>, vector<32x128xf32>, vector<32x128xf32> -> vector<32x128xf32>
    %25 = vector.broadcast %22 : vector<32x1xf32> to vector<32x128xf32>
    %26 = arith.addf %24, %25 : vector<32x128xf32>
    %27 = math.tanh %26 : vector<32x128xf32>
    %28 = vector.extract_strided_slice %21 {offsets = [0, 1], sizes = [32, 1], strides = [1, 1]} : vector<32x32xf32> to vector<32x1xf32>
    %29 = tpu.transpose %27, [1, 0] : vector<32x128xf32> -> vector<128x32xf32>
    %cst_10 = arith.constant dense<0.000000e+00> : vector<128x1xf32>
    %30 = tpu.matmul %29, %28, %cst_10 {dimension_numbers = #tpu.dot_dimension_numbers<[1], [0], [0], [1], [0, 0, 1, 1], [], []>, precision = #tpu.contract_precision<fp32>} : vector<128x32xf32>, vector<32x1xf32>, vector<128x1xf32> -> vector<128x1xf32>
    %31 = vector.extract_strided_slice %30 {offsets = [64, 0], sizes = [64, 1], strides = [1, 1]} : vector<128x1xf32> to vector<64x1xf32>
    %32 = vector.extract_strided_slice %30 {offsets = [0, 0], sizes = [64, 1], strides = [1, 1]} : vector<128x1xf32> to vector<64x1xf32>
    %33 = arith.subf %31, %32 : vector<64x1xf32>
    %34 = arith.negf %33 : vector<64x1xf32>
    %35 = math.exp %34 : vector<64x1xf32>
    %cst_11 = arith.constant 1.000000e+00 : f32
    %36 = vector.broadcast %cst_11 : f32 to vector<64x1xf32>
    %37 = arith.addf %36, %35 : vector<64x1xf32>
    %38 = arith.divf %36, %37 : vector<64x1xf32>
    %39 = vector.extract_strided_slice %38 {offsets = [0, 0], sizes = [32, 1], strides = [1, 1]} : vector<64x1xf32> to vector<32x1xf32>
    %40 = vector.extract_strided_slice %38 {offsets = [32, 0], sizes = [32, 1], strides = [1, 1]} : vector<64x1xf32> to vector<32x1xf32>
    %41 = arith.mulf %39, %40 : vector<32x1xf32>
    %42 = vector.extract_strided_slice %41 {offsets = [0, 0], sizes = [8, 1], strides = [1, 1]} : vector<32x1xf32> to vector<8x1xf32>
    %43 = vector.extract_strided_slice %41 {offsets = [8, 0], sizes = [8, 1], strides = [1, 1]} : vector<32x1xf32> to vector<8x1xf32>
    %44 = vector.extract_strided_slice %41 {offsets = [16, 0], sizes = [8, 1], strides = [1, 1]} : vector<32x1xf32> to vector<8x1xf32>
    %45 = vector.extract_strided_slice %41 {offsets = [24, 0], sizes = [8, 1], strides = [1, 1]} : vector<32x1xf32> to vector<8x1xf32>
    %46 = tpu.concatenate %42, %43, %44, %45 in 1 : vector<8x1xf32>, vector<8x1xf32>, vector<8x1xf32>, vector<8x1xf32> -> vector<8x4xf32>
    %c96 = arith.constant 96 : index
    %c0_12 = arith.constant 0 : index
    %47 = vector.load %arg1[%c96, %c0_12] : memref<104x32xf32, #tpu.memory_space<vmem>>, vector<1x4xf32>
    %c0_13 = arith.constant 0 : index
    %c0_14 = arith.constant 0 : index
    %48 = vector.load %arg3[%c0_13, %c0_14] : memref<8x4xf32, #tpu.memory_space<vmem>>, vector<8x4xf32>
    tpu.vector_store %arg3[%c0_13, %c0_14], %46 {strides = array<i32>} : memref<8x4xf32, #tpu.memory_space<vmem>>, vector<8x4xf32>,
    %49 = vector.broadcast %47 : vector<1x4xf32> to vector<8x4xf32>
    %50 = arith.mulf %46, %49 : vector<8x4xf32>
    %cst_15 = arith.constant dense<0.000000e+00> : vector<8xf32>
    %51 = vector.multi_reduction <add>, %50, %cst_15 [1] : vector<8x4xf32> to vector<8xf32>
    %52 = vector.shape_cast %51 : vector<8xf32> to vector<8x1xf32>
    %c0_16 = arith.constant 0 : index
    %c0_17 = arith.constant 0 : index
    %53 = vector.load %arg2[%c0_16, %c0_17] : memref<8x1xf32, #tpu.memory_space<vmem>>, vector<8x1xf32>
    tpu.vector_store %arg2[%c0_16, %c0_17], %52 {strides = array<i32>} : memref<8x1xf32, #tpu.memory_space<vmem>>, vector<8x1xf32>,
    return
  }
}

</mosaic_0001>

<llo_original>
// kernel: tile.44
$region0: #{tile.44}
  %s0 = inlined_call_operand.vmem [shape: s32[4,8], index: 0, kind: input, shape index: {}]
  %s1 = inlined_call_operand.vmem [shape: s32[32], index: 1, kind: output, shape index: {}]
  $region1: #{tile.44} parent=0
    #allocation0 [shape = 'u8[4096]{0}', space=vmem, size = 0x1000, scoped, tag = 'scoped mem for output reshape']
    #allocation1 [shape = 'u8[4096]{0}', space=vmem, size = 0x1000, scoped, tag = 'scoped mem for input reshape']
    %s3 = sshllo.u32 0, 4
    %v4 = vld [vmem:[%s0] sm:%s3]
    %5 = vst [vmem:[#allocation1] sm:%s3] %v4
    %v6 = vld [vmem:[#allocation1] sm:$0x1]
    %vm7 = vcmask 64512
    %8 = vst.msk [vmem:[#allocation0] sm:$0x1] %vm7, %v6
    %s9 = scalar_lea.vmem [#allocation1], 3
    %v10 = vld [vmem:[%s9] sm:$0x1]
    %11 = vrot.lane.b32.xlu0 %v10, 24
    %v12 = vpop.permute.xlu0 %11
    %vm13 = vcmask 261312
    %14 = vst.msk [vmem:[#allocation0] sm:$0x1] %vm13, %v12
    %s15 = scalar_lea.vmem [#allocation1], 2
    %v16 = vld [vmem:[%s15] sm:$0x1]
    %17 = vrot.lane.b32.xlu0 %v16, 16
    %v18 = vpop.permute.xlu0 %17
    %vm19 = vcmask 195712
    %20 = vst.msk [vmem:[#allocation0] sm:$0x1] %vm19, %v18
    %s21 = scalar_lea.vmem [#allocation1], 1
    %v22 = vld [vmem:[%s21] sm:$0x1]
    %23 = vrot.lane.b32.xlu0 %v22, 8
    %v24 = vpop.permute.xlu0 %23
    %vm25 = vcmask 130112
    %26 = vst.msk [vmem:[#allocation0] sm:$0x1] %vm25, %v24
    %s28 = sshllo.u32 0, 1
    %v30 = vld [vmem:[#allocation0] sm:%s28]
    %s31 = sshllo.u32 0, 1
    %32 = vst [vmem:[%s1] sm:%s31] %v30

// kernel: tile.43
$region0: #{tile.43}
  #allocation0 [shape = 's32[1]{0}', space=sflag, size = 0x4, scoped, tag = 'scoped memory for tile.43']
  %s0 = inlined_call_operand.vmem [shape: s32[8], index: 0, kind: input, shape index: {}]
  %s1 = inlined_call_operand.vmem [shape: s32[4,8], index: 1, kind: output, shape index: {}]
  // Predicated region
  $region2: #{tile.43} parent=0 // pred_check
    _
  $region3: #{tile.43} parent=0 // pred_check_branch
    %3 = sbr.rel (0) target = $region5
  $region4: #{tile.43} parent=0 // pred_region
    _
  $region5: #{tile.43} parent=0 // pred_fallthru
    _
  %v4 = vld [vmem:[%s0] ss:$0 sm:$0xff]
  %5 = vst [vmem:[%s1] sm:$0xf] %v4

// kernel: forward.1
$region0: #{forward.1}
  #allocation0 [shape = 'u32[]', space=smem, size = 0x4, offset = 0x4, fixed_abs, tag = 'smem constant byte address 0x4 - core index']
  #allocation1 [shape = 'u32[144,128]{1,0:T(1,128)}', space=vmem, size = 0x12000, scoped, tag = 'internal scratch']
  %s0 = inlined_call_operand.vmem [shape: s32[3,128], index: 0, kind: input, shape index: {}]
  %s1 = inlined_call_operand.vmem [shape: f32[104,32], index: 1, kind: input, shape index: {}]
  %s2 = inlined_call_operand.vmem [shape: f32[8,1], index: 2, kind: output, shape index: {0}]
  %s3 = inlined_call_operand.vmem [shape: f32[8,4], index: 3, kind: output, shape index: {1}]
  %4 = xla_tuple %s2, %s3
  %s5 = sld [smem:[#allocation0]]
  $region26: #{forward.1} parent=0
    _
  %s7 = ssub.s32 1, %s5
  %s8 = scalar_select 0, %s7, %s5
  // Predicated region
  $region2: #{forward.1} parent=0 // pred_check
    _
  $region3: #{forward.1} parent=0 // pred_check_branch
    %10 = sbr.rel (0) target = $region5
  $region4: #{forward.1} parent=0 // pred_region
    _
  $region5: #{forward.1} parent=0 // pred_fallthru
    _
  // Predicated region
  $region6: #{forward.1} parent=0 // pred_check
    _
  $region7: #{forward.1} parent=0 // pred_check_branch
    %12 = sbr.rel (0) target = $region9
  $region8: #{forward.1} parent=0 // pred_region
    _
  $region9: #{forward.1} parent=0 // pred_fallthru
    _
  %v13 = vld [vmem:[%s0] sm:$0x1]
  %v14 = vld [vmem:[%s0 + $0x1] sm:$0x1]
  %v15 = vld [vmem:[%s0 + $0x2] sm:$0x1]
  %v16 = vlaneseq
  %v17 = vshrl.u32 %v16, 7
  %v18 = vadd.s32 %v17, 8
  %v19 = vadd.s32 %v17, 16
  %v20 = vadd.s32 %v17, 24
  %v21 = vlaneseq
  %v22 = vshrl.u32 %v21, 7
  %v23 = vsub.s32 0, %v22
  %v24 = vrot.slane %v13, %v23
  %vm25 = vcmp.eq.s32.totalorder %v17, %v24
  %vm26 = vcmp.eq.s32.totalorder %v18, %v24
  %vm27 = vcmp.eq.s32.totalorder %v19, %v24
  %vm28 = vcmp.eq.s32.totalorder %v20, %v24
  %v29 = vlaneseq
  %v30 = vshrl.u32 %v29, 7
  %v31 = vsub.s32 0, %v30
  %v32 = vrot.slane %v14, %v31
  %vm33 = vcmp.eq.s32.totalorder %v17, %v32
  %vm34 = vcmp.eq.s32.totalorder %v18, %v32
  %vm35 = vcmp.eq.s32.totalorder %v19, %v32
  %vm36 = vcmp.eq.s32.totalorder %v20, %v32
  %vm37 = vmor %vm25, %vm33
  %vm38 = vmor %vm26, %vm34
  %vm39 = vmor %vm27, %vm35
  %vm40 = vmor %vm28, %vm36
  %v41 = vlaneseq
  %v42 = vshrl.u32 %v41, 7
  %v43 = vsub.s32 0, %v42
  %v44 = vrot.slane %v15, %v43
  %vm45 = vcmp.eq.s32.totalorder %v17, %v44
  %vm46 = vcmp.eq.s32.totalorder %v18, %v44
  %vm47 = vcmp.eq.s32.totalorder %v19, %v44
  %vm48 = vcmp.eq.s32.totalorder %v20, %v44
  %vm49 = vmor %vm37, %vm45
  %vm50 = vmor %vm38, %vm46
  %vm51 = vmor %vm39, %vm47
  %vm52 = vmor %vm40, %vm48
  %vm53 = vcmp.eq.s32.totalorder %v17, 28
  %vm54 = vcmp.eq.s32.totalorder %v18, 28
  %vm55 = vcmp.eq.s32.totalorder %v19, 28
  %vm56 = vcmp.eq.s32.totalorder %v20, 28
  %vm57 = vmor %vm49, %vm53
  %vm58 = vmor %vm50, %vm54
  %vm59 = vmor %vm51, %vm55
  %vm60 = vmor %vm52, %vm56
  %v61 = vsel %vm57, 1.0, 0.0
  %v62 = vsel %vm58, 1.0, 0.0
  %v63 = vsel %vm59, 1.0, 0.0
  %v64 = vsel %vm60, 1.0, 0.0
  %v65 = vld [vmem:[%s1] sm:$0xff]
  %v66 = vld [vmem:[%s1 + $0x8] sm:$0xff]
  %v67 = vld [vmem:[%s1 + $0x10] sm:$0xff]
  %v68 = vld [vmem:[%s1 + $0x18] sm:$0xff]
  %vm69 = vcmask 261120
  %v71 = vsel %vm69, %v65, 0
  %v74 = vsel %vm69, %v66, 0
  %v77 = vsel %vm69, %v67, 0
  %v80 = vsel %vm69, %v68, 0
  %82 = vmatprep.subr.mxu0 0.0
  %83 = vmatpush1.msra.mxu0 %v61
  %84 = vmatprep.subr.mxu0 0.0
  %85 = vmatpush1.msra.mxu0 %v62
  %86 = vmatprep.subr.mxu0 0.0
  %87 = vmatpush1.msra.mxu0 %v63
  %88 = vmatprep.subr.mxu0 0.0
  %89 = vmatpush1.msra.mxu0 %v64
  %90 = vmatprep.subr.mxu0 0.0
  %91 = vmatpush1.msra.mxu0 0.0
  %92 = vmatprep.subr.mxu0 0.0
  %93 = vmatpush1.msra.mxu0 0.0
  %94 = vmatprep.subr.mxu0 0.0
  %95 = vmatpush1.msra.mxu0 0.0
  %96 = vmatprep.subr.mxu0 0.0
  %97 = vmatpush1.msra.mxu0 0.0
  %98 = vmatprep.subr.mxu0 0.0
  %99 = vmatpush1.msra.mxu0 0.0
  %100 = vmatprep.subr.mxu0 0.0
  %101 = vmatpush1.msra.mxu0 0.0
  %102 = vmatprep.subr.mxu0 0.0
  %103 = vmatpush1.msra.mxu0 0.0
  %104 = vmatprep.subr.mxu0 0.0
  %105 = vmatpush1.msra.mxu0 0.0
  %106 = vmatprep.subr.mxu0 0.0
  %107 = vmatpush1.msra.mxu0 0.0
  %108 = vmatprep.subr.mxu0 0.0
  %109 = vmatpush1.msra.mxu0 0.0
  %110 = vmatprep.subr.mxu0 0.0
  %111 = vmatpush1.msra.mxu0 0.0
  %112 = vmatprep.subr.mxu0 0.0
  %113 = vmatpush1.msra.mxu0 0.0
  %114 = vmatprep.subr.mxu0 0.0
  %115 = vmatpush1.msra.mxu0 0.0
  %116 = vmatprep.subr.mxu0 0.0
  %117 = vmatpush1.msra.mxu0 0.0
  %118 = vmatprep.subr.mxu0 0.0
  %119 = vmatpush1.msra.mxu0 0.0
  %120 = vmatprep.subr.mxu0 0.0
  %121 = vmatpush1.msra.mxu0 0.0
  %122 = vmatprep.subr.mxu0 0.0
  %123 = vmatpush1.msra.mxu0 0.0
  %124 = vmatprep.subr.mxu0 0.0
  %125 = vmatpush1.msra.mxu0 0.0
  %126 = vmatprep.subr.mxu0 0.0
  %127 = vmatpush1.msra.mxu0 0.0
  %128 = vmatprep.subr.mxu0 0.0
  %129 = vmatpush1.msra.mxu0 0.0
  %130 = vmatprep.subr.mxu0 0.0
  %131 = vmatpush1.msra.mxu0 0.0
  %132 = vmatprep.subr.mxu0 0.0
  %133 = vmatpush1.msra.mxu0 0.0
  %134 = vmatprep.subr.mxu0 0.0
  %135 = vmatpush1.msra.mxu0 0.0
  %136 = vmatprep.subr.mxu0 0.0
  %137 = vmatpush1.msra.mxu0 0.0
  %138 = vmatprep.subr.mxu0 0.0
  %139 = vmatpush1.msra.mxu0 0.0
  %140 = vmatprep.subr.mxu0 0.0
  %141 = vmatpush1.msra.mxu0 0.0
  %142 = vmatprep.subr.mxu0 0.0
  %143 = vmatpush1.msra.mxu0 0.0
  %144 = vmatprep.subr.mxu0 0.0
  %145 = vmatpush1.msra.mxu0 0.0
  %146 = vmatprep.mubr.f32.mxu0 0.0
  %v147 = vand.u32 %v71, 4294901760
  %v148 = vsub.f32 %v71, %v147
  %v149 = vand.u32 %v148, 4294901760
  %v150 = vsub.f32 %v148, %v149
  %v151 = vand.u32 %v150, 4294901760
  %152 = vmatmul.mubr.f32.gmra.mrb[0].mxu0 %v151
  %v153 = vpop.f32.mrb[0].mxu0
  %v154 = vadd.f32 0.0, %v153
  %v155 = vpop.f32.mrb[0].mxu0
  %156 = vmatprep.mubr.f32.mxu0 0.0
  %v157 = vand.u32 %v74, 4294901760
  %v158 = vsub.f32 %v74, %v157
  %v159 = vand.u32 %v158, 4294901760
  %v160 = vsub.f32 %v158, %v159
  %v161 = vand.u32 %v160, 4294901760
  %162 = vmatmul.mubr.f32.gmra.mrb[0].mxu0 %v161
  %v163 = vpop.f32.mrb[0].mxu0
  %v164 = vadd.f32 0.0, %v163
  %v165 = vpop.f32.mrb[0].mxu0
  %166 = vmatprep.mubr.f32.mxu0 0.0
  %v167 = vand.u32 %v77, 4294901760
  %v168 = vsub.f32 %v77, %v167
  %v169 = vand.u32 %v168, 4294901760
  %v170 = vsub.f32 %v168, %v169
  %v171 = vand.u32 %v170, 4294901760
  %172 = vmatmul.mubr.f32.gmra.mrb[0].mxu0 %v171
  %v173 = vpop.f32.mrb[0].mxu0
  %v174 = vadd.f32 0.0, %v173
  %v175 = vpop.f32.mrb[0].mxu0
  %176 = vmatprep.mubr.f32.mxu0 0.0
  %v177 = vand.u32 %v80, 4294901760
  %v178 = vsub.f32 %v80, %v177
  %v179 = vand.u32 %v178, 4294901760
  %v180 = vsub.f32 %v178, %v179
  %v181 = vand.u32 %v180, 4294901760
  %182 = vmatmul.mubr.f32.gmra.mrb[0].mxu0 %v181
  %v183 = vpop.f32.mrb[0].mxu0
  %v184 = vadd.f32 0.0, %v183
  %v185 = vpop.f32.mrb[0].mxu0
  %186 = vdwg.mxu0
  %187 = vmatprep.subr.mxu0 0.0
  %v188 = vsub.f32 %v61, %v61
  %v189 = vand.u32 %v188, 4294901760
  %v190 = vsub.f32 %v188, %v189
  %v191 = vand.u32 %v190, 4294901760
  %192 = vmatpush1.msra.mxu0 %v191
  %193 = vmatprep.subr.mxu0 0.0
  %v194 = vsub.f32 %v62, %v62
  %v195 = vand.u32 %v194, 4294901760
  %v196 = vsub.f32 %v194, %v195
  %v197 = vand.u32 %v196, 4294901760
  %198 = vmatpush1.msra.mxu0 %v197
  %199 = vmatprep.subr.mxu0 0.0
  %v200 = vsub.f32 %v63, %v63
  %v201 = vand.u32 %v200, 4294901760
  %v202 = vsub.f32 %v200, %v201
  %v203 = vand.u32 %v202, 4294901760
  %204 = vmatpush1.msra.mxu0 %v203
  %205 = vmatprep.subr.mxu0 0.0
  %v206 = vsub.f32 %v64, %v64
  %v207 = vand.u32 %v206, 4294901760
  %v208 = vsub.f32 %v206, %v207
  %v209 = vand.u32 %v208, 4294901760
  %210 = vmatpush1.msra.mxu0 %v209
  %211 = vmatprep.subr.mxu0 0.0
  %212 = vmatpush1.msra.mxu0 0.0
  %213 = vmatprep.subr.mxu0 0.0
  %214 = vmatpush1.msra.mxu0 0.0
  %215 = vmatprep.subr.mxu0 0.0
  %216 = vmatpush1.msra.mxu0 0.0
  %217 = vmatprep.subr.mxu0 0.0
  %218 = vmatpush1.msra.mxu0 0.0
  %219 = vmatprep.subr.mxu0 0.0
  %220 = vmatpush1.msra.mxu0 0.0
  %221 = vmatprep.subr.mxu0 0.0
  %222 = vmatpush1.msra.mxu0 0.0
  %223 = vmatprep.subr.mxu0 0.0
  %224 = vmatpush1.msra.mxu0 0.0
  %225 = vmatprep.subr.mxu0 0.0
  %226 = vmatpush1.msra.mxu0 0.0
  %227 = vmatprep.subr.mxu0 0.0
  %228 = vmatpush1.msra.mxu0 0.0
  %229 = vmatprep.subr.mxu0 0.0
  %230 = vmatpush1.msra.mxu0 0.0
  %231 = vmatprep.subr.mxu0 0.0
  %232 = vmatpush1.msra.mxu0 0.0
  %233 = vmatprep.subr.mxu0 0.0
  %234 = vmatpush1.msra.mxu0 0.0
  %235 = vmatprep.subr.mxu0 0.0
  %236 = vmatpush1.msra.mxu0 0.0
  %237 = vmatprep.subr.mxu0 0.0
  %238 = vmatpush1.msra.mxu0 0.0
  %239 = vmatprep.subr.mxu0 0.0
  %240 = vmatpush1.msra.mxu0 0.0
  %241 = vmatprep.subr.mxu0 0.0
  %242 = vmatpush1.msra.mxu0 0.0
  %243 = vmatprep.subr.mxu0 0.0
  %244 = vmatpush1.msra.mxu0 0.0
  %245 = vmatprep.subr.mxu0 0.0
  %246 = vmatpush1.msra.mxu0 0.0
  %247 = vmatprep.subr.mxu0 0.0
  %248 = vmatpush1.msra.mxu0 0.0
  %249 = vmatprep.subr.mxu0 0.0
  %250 = vmatpush1.msra.mxu0 0.0
  %251 = vmatprep.subr.mxu0 0.0
  %252 = vmatpush1.msra.mxu0 0.0
  %253 = vmatprep.subr.mxu0 0.0
  %254 = vmatpush1.msra.mxu0 0.0
  %255 = vmatprep.subr.mxu0 0.0
  %256 = vmatpush1.msra.mxu0 0.0
  %257 = vmatprep.subr.mxu0 0.0
  %258 = vmatpush1.msra.mxu0 0.0
  %259 = vmatprep.subr.mxu0 0.0
  %260 = vmatpush1.msra.mxu0 0.0
  %261 = vmatprep.subr.mxu0 0.0
  %262 = vmatpush1.msra.mxu0 0.0
  %263 = vmatprep.subr.mxu0 0.0
  %264 = vmatpush1.msra.mxu0 0.0
  %265 = vmatprep.subr.mxu0 0.0
  %266 = vmatpush1.msra.mxu0 0.0
  %267 = vmatprep.mubr.f32.mxu0 0.0
  %v268 = vand.u32 %v71, 4294901760
  %269 = vmatmul.mubr.f32.gmra.mrb[0].mxu0 %v268
  %v270 = vpop.f32.mrb[0].mxu0
  %v271 = vadd.f32 %v154, %v270
  %v272 = vpop.f32.mrb[0].mxu0
  %273 = vmatprep.mubr.f32.mxu0 0.0
  %v274 = vand.u32 %v74, 4294901760
  %275 = vmatmul.mubr.f32.gmra.mrb[0].mxu0 %v274
  %v276 = vpop.f32.mrb[0].mxu0
  %v277 = vadd.f32 %v164, %v276
  %v278 = vpop.f32.mrb[0].mxu0
  %279 = vmatprep.mubr.f32.mxu0 0.0
  %v280 = vand.u32 %v77, 4294901760
  %281 = vmatmul.mubr.f32.gmra.mrb[0].mxu0 %v280
  %v282 = vpop.f32.mrb[0].mxu0
  %v283 = vadd.f32 %v174, %v282
  %v284 = vpop.f32.mrb[0].mxu0
  %285 = vmatprep.mubr.f32.mxu0 0.0
  %v286 = vand.u32 %v80, 4294901760
  %287 = vmatmul.mubr.f32.gmra.mrb[0].mxu0 %v286
  %v288 = vpop.f32.mrb[0].mxu0
  %v289 = vadd.f32 %v184, %v288
  %v290 = vpop.f32.mrb[0].mxu0
  %291 = vdwg.mxu0
  %292 = vmatprep.subr.mxu0 0.0
  %v293 = vsub.f32 %v61, %v61
  %294 = vmatpush1.msra.mxu0 %v293
  %295 = vmatprep.subr.mxu0 0.0
  %v296 = vsub.f32 %v62, %v62
  %297 = vmatpush1.msra.mxu0 %v296
  %298 = vmatprep.subr.mxu0 0.0
  %v299 = vsub.f32 %v63, %v63
  %300 = vmatpush1.msra.mxu0 %v299
  %301 = vmatprep.subr.mxu0 0.0
  %v302 = vsub.f32 %v64, %v64
  %303 = vmatpush1.msra.mxu0 %v302
  %304 = vmatprep.subr.mxu0 0.0
  %305 = vmatpush1.msra.mxu0 0.0
  %306 = vmatprep.subr.mxu0 0.0
  %307 = vmatpush1.msra.mxu0 0.0
  %308 = vmatprep.subr.mxu0 0.0
  %309 = vmatpush1.msra.mxu0 0.0
  %310 = vmatprep.subr.mxu0 0.0
  %311 = vmatpush1.msra.mxu0 0.0
  %312 = vmatprep.subr.mxu0 0.0
  %313 = vmatpush1.msra.mxu0 0.0
  %314 = vmatprep.subr.mxu0 0.0
  %315 = vmatpush1.msra.mxu0 0.0
  %316 = vmatprep.subr.mxu0 0.0
  %317 = vmatpush1.msra.mxu0 0.0
  %318 = vmatprep.subr.mxu0 0.0
  %319 = vmatpush1.msra.mxu0 0.0
  %320 = vmatprep.subr.mxu0 0.0
  %321 = vmatpush1.msra.mxu0 0.0
  %322 = vmatprep.subr.mxu0 0.0
  %323 = vmatpush1.msra.mxu0 0.0
  %324 = vmatprep.subr.mxu0 0.0
  %325 = vmatpush1.msra.mxu0 0.0
  %326 = vmatprep.subr.mxu0 0.0
  %327 = vmatpush1.msra.mxu0 0.0
  %328 = vmatprep.subr.mxu0 0.0
  %329 = vmatpush1.msra.mxu0 0.0
  %330 = vmatprep.subr.mxu0 0.0
  %331 = vmatpush1.msra.mxu0 0.0
  %332 = vmatprep.subr.mxu0 0.0
  %333 = vmatpush1.msra.mxu0 0.0
  %334 = vmatprep.subr.mxu0 0.0
  %335 = vmatpush1.msra.mxu0 0.0
  %336 = vmatprep.subr.mxu0 0.0
  %337 = vmatpush1.msra.mxu0 0.0
  %338 = vmatprep.subr.mxu0 0.0
  %339 = vmatpush1.msra.mxu0 0.0
  %340 = vmatprep.subr.mxu0 0.0
  %341 = vmatpush1.msra.mxu0 0.0
  %342 = vmatprep.subr.mxu0 0.0
  %343 = vmatpush1.msra.mxu0 0.0
  %344 = vmatprep.subr.mxu0 0.0
  %345 = vmatpush1.msra.mxu0 0.0
  %346 = vmatprep.subr.mxu0 0.0
  %347 = vmatpush1.msra.mxu0 0.0
  %348 = vmatprep.subr.mxu0 0.0
  %349 = vmatpush1.msra.mxu0 0.0
  %350 = vmatprep.subr.mxu0 0.0
  %351 = vmatpush1.msra.mxu0 0.0
  %352 = vmatprep.subr.mxu0 0.0
  %353 = vmatpush1.msra.mxu0 0.0
  %354 = vmatprep.subr.mxu0 0.0
  %355 = vmatpush1.msra.mxu0 0.0
  %356 = vmatprep.subr.mxu0 0.0
  %357 = vmatpush1.msra.mxu0 0.0
  %358 = vmatprep.subr.mxu0 0.0
  %359 = vmatpush1.msra.mxu0 0.0
  %360 = vmatprep.mubr.f32.mxu0 0.0
  %v361 = vand.u32 %v71, 4294901760
  %v362 = vsub.f32 %v71, %v361
  %363 = vmatmul.mubr.f32.gmra.mrb[0].mxu0 %v362
  %v364 = vpop.f32.mrb[0].mxu0
  %v365 = vadd.f32 %v271, %v364
  %v366 = vpop.f32.mrb[0].mxu0
  %367 = vmatprep.mubr.f32.mxu0 0.0
  %v368 = vand.u32 %v74, 4294901760
  %v369 = vsub.f32 %v74, %v368
  %370 = vmatmul.mubr.f32.gmra.mrb[0].mxu0 %v369
  %v371 = vpop.f32.mrb[0].mxu0
  %v372 = vadd.f32 %v277, %v371
  %v373 = vpop.f32.mrb[0].mxu0
  %374 = vmatprep.mubr.f32.mxu0 0.0
  %v375 = vand.u32 %v77, 4294901760
  %v376 = vsub.f32 %v77, %v375
  %377 = vmatmul.mubr.f32.gmra.mrb[0].mxu0 %v376
  %v378 = vpop.f32.mrb[0].mxu0
  %v379 = vadd.f32 %v283, %v378
  %v380 = vpop.f32.mrb[0].mxu0
  %381 = vmatprep.mubr.f32.mxu0 0.0
  %v382 = vand.u32 %v80, 4294901760
  %v383 = vsub.f32 %v80, %v382
  %384 = vmatmul.mubr.f32.gmra.mrb[0].mxu0 %v383
  %v385 = vpop.f32.mrb[0].mxu0
  %v386 = vadd.f32 %v289, %v385
  %v387 = vpop.f32.mrb[0].mxu0
  %388 = vdwg.mxu0
  %389 = vmatprep.subr.mxu0 0.0
  %390 = vmatpush1.msra.mxu0 %v61
  %391 = vmatprep.subr.mxu0 0.0
  %392 = vmatpush1.msra.mxu0 %v62
  %393 = vmatprep.subr.mxu0 0.0
  %394 = vmatpush1.msra.mxu0 %v63
  %395 = vmatprep.subr.mxu0 0.0
  %396 = vmatpush1.msra.mxu0 %v64
  %397 = vmatprep.subr.mxu0 0.0
  %398 = vmatpush1.msra.mxu0 0.0
  %399 = vmatprep.subr.mxu0 0.0
  %400 = vmatpush1.msra.mxu0 0.0
  %401 = vmatprep.subr.mxu0 0.0
  %402 = vmatpush1.msra.mxu0 0.0
  %403 = vmatprep.subr.mxu0 0.0
  %404 = vmatpush1.msra.mxu0 0.0
  %405 = vmatprep.subr.mxu0 0.0
  %406 = vmatpush1.msra.mxu0 0.0
  %407 = vmatprep.subr.mxu0 0.0
  %408 = vmatpush1.msra.mxu0 0.0
  %409 = vmatprep.subr.mxu0 0.0
  %410 = vmatpush1.msra.mxu0 0.0
  %411 = vmatprep.subr.mxu0 0.0
  %412 = vmatpush1.msra.mxu0 0.0
  %413 = vmatprep.subr.mxu0 0.0
  %414 = vmatpush1.msra.mxu0 0.0
  %415 = vmatprep.subr.mxu0 0.0
  %416 = vmatpush1.msra.mxu0 0.0
  %417 = vmatprep.subr.mxu0 0.0
  %418 = vmatpush1.msra.mxu0 0.0
  %419 = vmatprep.subr.mxu0 0.0
  %420 = vmatpush1.msra.mxu0 0.0
  %421 = vmatprep.subr.mxu0 0.0
  %422 = vmatpush1.msra.mxu0 0.0
  %423 = vmatprep.subr.mxu0 0.0
  %424 = vmatpush1.msra.mxu0 0.0
  %425 = vmatprep.subr.mxu0 0.0
  %426 = vmatpush1.msra.mxu0 0.0
  %427 = vmatprep.subr.mxu0 0.0
  %428 = vmatpush1.msra.mxu0 0.0
  %429 = vmatprep.subr.mxu0 0.0
  %430 = vmatpush1.msra.mxu0 0.0
  %431 = vmatprep.subr.mxu0 0.0
  %432 = vmatpush1.msra.mxu0 0.0
  %433 = vmatprep.subr.mxu0 0.0
  %434 = vmatpush1.msra.mxu0 0.0
  %435 = vmatprep.subr.mxu0 0.0
  %436 = vmatpush1.msra.mxu0 0.0
  %437 = vmatprep.subr.mxu0 0.0
  %438 = vmatpush1.msra.mxu0 0.0
  %439 = vmatprep.subr.mxu0 0.0
  %440 = vmatpush1.msra.mxu0 0.0
  %441 = vmatprep.subr.mxu0 0.0
  %442 = vmatpush1.msra.mxu0 0.0
  %443 = vmatprep.subr.mxu0 0.0
  %444 = vmatpush1.msra.mxu0 0.0
  %445 = vmatprep.subr.mxu0 0.0
  %446 = vmatpush1.msra.mxu0 0.0
  %447 = vmatprep.subr.mxu0 0.0
  %448 = vmatpush1.msra.mxu0 0.0
  %449 = vmatprep.subr.mxu0 0.0
  %450 = vmatpush1.msra.mxu0 0.0
  %451 = vmatprep.subr.mxu0 0.0
  %452 = vmatpush1.msra.mxu0 0.0
  %453 = vmatprep.mubr.f32.mxu0 0.0
  %v454 = vand.u32 %v71, 4294901760
  %v455 = vsub.f32 %v71, %v454
  %v456 = vand.u32 %v455, 4294901760
  %457 = vmatmul.mubr.f32.gmra.mrb[0].mxu0 %v456
  %v458 = vpop.f32.mrb[0].mxu0
  %v459 = vadd.f32 %v365, %v458
  %v460 = vpop.f32.mrb[0].mxu0
  %461 = vmatprep.mubr.f32.mxu0 0.0
  %v462 = vand.u32 %v74, 4294901760
  %v463 = vsub.f32 %v74, %v462
  %v464 = vand.u32 %v463, 4294901760
  %465 = vmatmul.mubr.f32.gmra.mrb[0].mxu0 %v464
  %v466 = vpop.f32.mrb[0].mxu0
  %v467 = vadd.f32 %v372, %v466
  %v468 = vpop.f32.mrb[0].mxu0
  %469 = vmatprep.mubr.f32.mxu0 0.0
  %v470 = vand.u32 %v77, 4294901760
  %v471 = vsub.f32 %v77, %v470
  %v472 = vand.u32 %v471, 4294901760
  %473 = vmatmul.mubr.f32.gmra.mrb[0].mxu0 %v472
  %v474 = vpop.f32.mrb[0].mxu0
  %v475 = vadd.f32 %v379, %v474
  %v476 = vpop.f32.mrb[0].mxu0
  %477 = vmatprep.mubr.f32.mxu0 0.0
  %v478 = vand.u32 %v80, 4294901760
  %v479 = vsub.f32 %v80, %v478
  %v480 = vand.u32 %v479, 4294901760
  %481 = vmatmul.mubr.f32.gmra.mrb[0].mxu0 %v480
  %v482 = vpop.f32.mrb[0].mxu0
  %v483 = vadd.f32 %v386, %v482
  %v484 = vpop.f32.mrb[0].mxu0
  %485 = vdwg.mxu0
  %486 = vmatprep.subr.mxu0 0.0
  %v487 = vsub.f32 %v61, %v61
  %v488 = vand.u32 %v487, 4294901760
  %489 = vmatpush1.msra.mxu0 %v488
  %490 = vmatprep.subr.mxu0 0.0
  %v491 = vsub.f32 %v62, %v62
  %v492 = vand.u32 %v491, 4294901760
  %493 = vmatpush1.msra.mxu0 %v492
  %494 = vmatprep.subr.mxu0 0.0
  %v495 = vsub.f32 %v63, %v63
  %v496 = vand.u32 %v495, 4294901760
  %497 = vmatpush1.msra.mxu0 %v496
  %498 = vmatprep.subr.mxu0 0.0
  %v499 = vsub.f32 %v64, %v64
  %v500 = vand.u32 %v499, 4294901760
  %501 = vmatpush1.msra.mxu0 %v500
  %502 = vmatprep.subr.mxu0 0.0
  %503 = vmatpush1.msra.mxu0 0.0
  %504 = vmatprep.subr.mxu0 0.0
  %505 = vmatpush1.msra.mxu0 0.0
  %506 = vmatprep.subr.mxu0 0.0
  %507 = vmatpush1.msra.mxu0 0.0
  %508 = vmatprep.subr.mxu0 0.0
  %509 = vmatpush1.msra.mxu0 0.0
  %510 = vmatprep.subr.mxu0 0.0
  %511 = vmatpush1.msra.mxu0 0.0
  %512 = vmatprep.subr.mxu0 0.0
  %513 = vmatpush1.msra.mxu0 0.0
  %514 = vmatprep.subr.mxu0 0.0
  %515 = vmatpush1.msra.mxu0 0.0
  %516 = vmatprep.subr.mxu0 0.0
  %517 = vmatpush1.msra.mxu0 0.0
  %518 = vmatprep.subr.mxu0 0.0
  %519 = vmatpush1.msra.mxu0 0.0
  %520 = vmatprep.subr.mxu0 0.0
  %521 = vmatpush1.msra.mxu0 0.0
  %522 = vmatprep.subr.mxu0 0.0
  %523 = vmatpush1.msra.mxu0 0.0
  %524 = vmatprep.subr.mxu0 0.0
  %525 = vmatpush1.msra.mxu0 0.0
  %526 = vmatprep.subr.mxu0 0.0
  %527 = vmatpush1.msra.mxu0 0.0
  %528 = vmatprep.subr.mxu0 0.0
  %529 = vmatpush1.msra.mxu0 0.0
  %530 = vmatprep.subr.mxu0 0.0
  %531 = vmatpush1.msra.mxu0 0.0
  %532 = vmatprep.subr.mxu0 0.0
  %533 = vmatpush1.msra.mxu0 0.0
  %534 = vmatprep.subr.mxu0 0.0
  %535 = vmatpush1.msra.mxu0 0.0
  %536 = vmatprep.subr.mxu0 0.0
  %537 = vmatpush1.msra.mxu0 0.0
  %538 = vmatprep.subr.mxu0 0.0
  %539 = vmatpush1.msra.mxu0 0.0
  %540 = vmatprep.subr.mxu0 0.0
  %541 = vmatpush1.msra.mxu0 0.0
  %542 = vmatprep.subr.mxu0 0.0
  %543 = vmatpush1.msra.mxu0 0.0
  %544 = vmatprep.subr.mxu0 0.0
  %545 = vmatpush1.msra.mxu0 0.0
  %546 = vmatprep.subr.mxu0 0.0
  %547 = vmatpush1.msra.mxu0 0.0
  %548 = vmatprep.subr.mxu0 0.0
  %549 = vmatpush1.msra.mxu0 0.0
  %550 = vmatprep.subr.mxu0 0.0
  %551 = vmatpush1.msra.mxu0 0.0
  %552 = vmatprep.subr.mxu0 0.0
  %553 = vmatpush1.msra.mxu0 0.0
  %554 = vmatprep.subr.mxu0 0.0
  %555 = vmatpush1.msra.mxu0 0.0
  %556 = vmatprep.subr.mxu0 0.0
  %557 = vmatpush1.msra.mxu0 0.0
  %558 = vmatprep.mubr.f32.mxu0 0.0
  %v559 = vand.u32 %v71, 4294901760
  %560 = vmatmul.mubr.f32.gmra.mrb[0].mxu0 %v559
  %v561 = vpop.f32.mrb[0].mxu0
  %v562 = vadd.f32 %v459, %v561
  %v563 = vpop.f32.mrb[0].mxu0
  %564 = vmatprep.mubr.f32.mxu0 0.0
  %v565 = vand.u32 %v74, 4294901760
  %566 = vmatmul.mubr.f32.gmra.mrb[0].mxu0 %v565
  %v567 = vpop.f32.mrb[0].mxu0
  %v568 = vadd.f32 %v467, %v567
  %v569 = vpop.f32.mrb[0].mxu0
  %570 = vmatprep.mubr.f32.mxu0 0.0
  %v571 = vand.u32 %v77, 4294901760
  %572 = vmatmul.mubr.f32.gmra.mrb[0].mxu0 %v571
  %v573 = vpop.f32.mrb[0].mxu0
  %v574 = vadd.f32 %v475, %v573
  %v575 = vpop.f32.mrb[0].mxu0
  %576 = vmatprep.mubr.f32.mxu0 0.0
  %v577 = vand.u32 %v80, 4294901760
  %578 = vmatmul.mubr.f32.gmra.mrb[0].mxu0 %v577
  %v579 = vpop.f32.mrb[0].mxu0
  %v580 = vadd.f32 %v483, %v579
  %v581 = vpop.f32.mrb[0].mxu0
  %582 = vdwg.mxu0
  %583 = vmatprep.subr.mxu0 0.0
  %584 = vmatpush1.msra.mxu0 %v61
  %585 = vmatprep.subr.mxu0 0.0
  %586 = vmatpush1.msra.mxu0 %v62
  %587 = vmatprep.subr.mxu0 0.0
  %588 = vmatpush1.msra.mxu0 %v63
  %589 = vmatprep.subr.mxu0 0.0
  %590 = vmatpush1.msra.mxu0 %v64
  %591 = vmatprep.subr.mxu0 0.0
  %592 = vmatpush1.msra.mxu0 0.0
  %593 = vmatprep.subr.mxu0 0.0
  %594 = vmatpush1.msra.mxu0 0.0
  %595 = vmatprep.subr.mxu0 0.0
  %596 = vmatpush1.msra.mxu0 0.0
  %597 = vmatprep.subr.mxu0 0.0
  %598 = vmatpush1.msra.mxu0 0.0
  %599 = vmatprep.subr.mxu0 0.0
  %600 = vmatpush1.msra.mxu0 0.0
  %601 = vmatprep.subr.mxu0 0.0
  %602 = vmatpush1.msra.mxu0 0.0
  %603 = vmatprep.subr.mxu0 0.0
  %604 = vmatpush1.msra.mxu0 0.0
  %605 = vmatprep.subr.mxu0 0.0
  %606 = vmatpush1.msra.mxu0 0.0
  %607 = vmatprep.subr.mxu0 0.0
  %608 = vmatpush1.msra.mxu0 0.0
  %609 = vmatprep.subr.mxu0 0.0
  %610 = vmatpush1.msra.mxu0 0.0
  %611 = vmatprep.subr.mxu0 0.0
  %612 = vmatpush1.msra.mxu0 0.0
  %613 = vmatprep.subr.mxu0 0.0
  %614 = vmatpush1.msra.mxu0 0.0
  %615 = vmatprep.subr.mxu0 0.0
  %616 = vmatpush1.msra.mxu0 0.0
  %617 = vmatprep.subr.mxu0 0.0
  %618 = vmatpush1.msra.mxu0 0.0
  %619 = vmatprep.subr.mxu0 0.0
  %620 = vmatpush1.msra.mxu0 0.0
  %621 = vmatprep.subr.mxu0 0.0
  %622 = vmatpush1.msra.mxu0 0.0
  %623 = vmatprep.subr.mxu0 0.0
  %624 = vmatpush1.msra.mxu0 0.0
  %625 = vmatprep.subr.mxu0 0.0
  %626 = vmatpush1.msra.mxu0 0.0
  %627 = vmatprep.subr.mxu0 0.0
  %628 = vmatpush1.msra.mxu0 0.0
  %629 = vmatprep.subr.mxu0 0.0
  %630 = vmatpush1.msra.mxu0 0.0
  %631 = vmatprep.subr.mxu0 0.0
  %632 = vmatpush1.msra.mxu0 0.0
  %633 = vmatprep.subr.mxu0 0.0
  %634 = vmatpush1.msra.mxu0 0.0
  %635 = vmatprep.subr.mxu0 0.0
  %636 = vmatpush1.msra.mxu0 0.0
  %637 = vmatprep.subr.mxu0 0.0
  %638 = vmatpush1.msra.mxu0 0.0
  %639 = vmatprep.subr.mxu0 0.0
  %640 = vmatpush1.msra.mxu0 0.0
  %641 = vmatprep.subr.mxu0 0.0
  %642 = vmatpush1.msra.mxu0 0.0
  %643 = vmatprep.subr.mxu0 0.0
  %644 = vmatpush1.msra.mxu0 0.0
  %645 = vmatprep.subr.mxu0 0.0
  %646 = vmatpush1.msra.mxu0 0.0
  %647 = vmatprep.mubr.f32.mxu0 0.0
  %v648 = vand.u32 %v71, 4294901760
  %649 = vmatmul.mubr.f32.gmra.mrb[0].mxu0 %v648
  %v650 = vpop.f32.mrb[0].mxu0
  %v651 = vadd.f32 %v562, %v650
  %v652 = vpop.f32.mrb[0].mxu0
  %653 = vmatprep.mubr.f32.mxu0 0.0
  %v654 = vand.u32 %v74, 4294901760
  %655 = vmatmul.mubr.f32.gmra.mrb[0].mxu0 %v654
  %v656 = vpop.f32.mrb[0].mxu0
  %v657 = vadd.f32 %v568, %v656
  %v658 = vpop.f32.mrb[0].mxu0
  %659 = vmatprep.mubr.f32.mxu0 0.0
  %v660 = vand.u32 %v77, 4294901760
  %661 = vmatmul.mubr.f32.gmra.mrb[0].mxu0 %v660
  %v662 = vpop.f32.mrb[0].mxu0
  %v663 = vadd.f32 %v574, %v662
  %v664 = vpop.f32.mrb[0].mxu0
  %665 = vmatprep.mubr.f32.mxu0 0.0
  %v666 = vand.u32 %v80, 4294901760
  %667 = vmatmul.mubr.f32.gmra.mrb[0].mxu0 %v666
  %v668 = vpop.f32.mrb[0].mxu0
  %v669 = vadd.f32 %v580, %v668
  %v670 = vpop.f32.mrb[0].mxu0
  %671 = vdwg.mxu0
  %v672 = vtanh.pop %v651
  %v673 = vtanh.pop %v657
  %v674 = vtanh.pop %v663
  %v675 = vtanh.pop %v669
  %v676 = vld [vmem:[%s1 + $0x40] sm:$0xff]
  %v677 = vld [vmem:[%s1 + $0x48] sm:$0xff]
  %v678 = vld [vmem:[%s1 + $0x50] sm:$0xff]
  %v679 = vld [vmem:[%s1 + $0x58] sm:$0xff]
  %v680 = vld [vmem:[%s1 + $0x20] sm:$0xff]
  %v681 = vld [vmem:[%s1 + $0x28] sm:$0xff]
  %v682 = vld [vmem:[%s1 + $0x30] sm:$0xff]
  %v683 = vld [vmem:[%s1 + $0x38] sm:$0xff]
  %685 = vset.pattern.permute.xlu0 0
  %686 = vperm.xlu0 %685, %v676
  %v687 = vpop.permute.xlu0 %686
  %690 = vset.pattern.permute.xlu0 0
  %691 = vperm.xlu0 %690, %v677
  %v692 = vpop.permute.xlu0 %691
  %695 = vset.pattern.permute.xlu0 0
  %696 = vperm.xlu0 %695, %v678
  %v697 = vpop.permute.xlu0 %696
  %700 = vset.pattern.permute.xlu0 0
  %701 = vperm.xlu0 %700, %v679
  %v702 = vpop.permute.xlu0 %701
  %v705 = vsel %vm69, %v680, 0
  %v708 = vsel %vm69, %v681, 0
  %v711 = vsel %vm69, %v682, 0
  %v714 = vsel %vm69, %v683, 0
  %716 = vmatprep.subr.mxu0 0.0
  %v717 = vand.u32 %v672, 4294901760
  %718 = vmatpush1.msra.mxu0 %v717
  %719 = vmatprep.subr.mxu0 0.0
  %v720 = vand.u32 %v673, 4294901760
  %721 = vmatpush1.msra.mxu0 %v720
  %722 = vmatprep.subr.mxu0 0.0
  %v723 = vand.u32 %v674, 4294901760
  %724 = vmatpush1.msra.mxu0 %v723
  %725 = vmatprep.subr.mxu0 0.0
  %v726 = vand.u32 %v675, 4294901760
  %727 = vmatpush1.msra.mxu0 %v726
  %728 = vmatprep.subr.mxu0 0.0
  %729 = vmatpush1.msra.mxu0 0.0
  %730 = vmatprep.subr.mxu0 0.0
  %731 = vmatpush1.msra.mxu0 0.0
  %732 = vmatprep.subr.mxu0 0.0
  %733 = vmatpush1.msra.mxu0 0.0
  %734 = vmatprep.subr.mxu0 0.0
  %735 = vmatpush1.msra.mxu0 0.0
  %736 = vmatprep.subr.mxu0 0.0
  %737 = vmatpush1.msra.mxu0 0.0
  %738 = vmatprep.subr.mxu0 0.0
  %739 = vmatpush1.msra.mxu0 0.0
  %740 = vmatprep.subr.mxu0 0.0
  %741 = vmatpush1.msra.mxu0 0.0
  %742 = vmatprep.subr.mxu0 0.0
  %743 = vmatpush1.msra.mxu0 0.0
  %744 = vmatprep.subr.mxu0 0.0
  %745 = vmatpush1.msra.mxu0 0.0
  %746 = vmatprep.subr.mxu0 0.0
  %747 = vmatpush1.msra.mxu0 0.0
  %748 = vmatprep.subr.mxu0 0.0
  %749 = vmatpush1.msra.mxu0 0.0
  %750 = vmatprep.subr.mxu0 0.0
  %751 = vmatpush1.msra.mxu0 0.0
  %752 = vmatprep.subr.mxu0 0.0
  %753 = vmatpush1.msra.mxu0 0.0
  %754 = vmatprep.subr.mxu0 0.0
  %755 = vmatpush1.msra.mxu0 0.0
  %756 = vmatprep.subr.mxu0 0.0
  %757 = vmatpush1.msra.mxu0 0.0
  %758 = vmatprep.subr.mxu0 0.0
  %759 = vmatpush1.msra.mxu0 0.0
  %760 = vmatprep.subr.mxu0 0.0
  %761 = vmatpush1.msra.mxu0 0.0
  %762 = vmatprep.subr.mxu0 0.0
  %763 = vmatpush1.msra.mxu0 0.0
  %764 = vmatprep.subr.mxu0 0.0
  %765 = vmatpush1.msra.mxu0 0.0
  %766 = vmatprep.subr.mxu0 0.0
  %767 = vmatpush1.msra.mxu0 0.0
  %768 = vmatprep.subr.mxu0 0.0
  %769 = vmatpush1.msra.mxu0 0.0
  %770 = vmatprep.subr.mxu0 0.0
  %771 = vmatpush1.msra.mxu0 0.0
  %772 = vmatprep.subr.mxu0 0.0
  %773 = vmatpush1.msra.mxu0 0.0
  %774 = vmatprep.subr.mxu0 0.0
  %775 = vmatpush1.msra.mxu0 0.0
  %776 = vmatprep.subr.mxu0 0.0
  %777 = vmatpush1.msra.mxu0 0.0
  %778 = vmatprep.subr.mxu0 0.0
  %779 = vmatpush1.msra.mxu0 0.0
  %780 = vmatprep.subr.mxu0 0.0
  %781 = vmatpush1.msra.mxu0 0.0
  %782 = vmatprep.subr.mxu0 0.0
  %783 = vmatpush1.msra.mxu0 0.0
  %784 = vmatprep.mubr.f32.mxu0 0.0
  %v785 = vand.u32 %v705, 4294901760
  %v786 = vsub.f32 %v705, %v785
  %v787 = vand.u32 %v786, 4294901760
  %v788 = vsub.f32 %v786, %v787
  %v789 = vand.u32 %v788, 4294901760
  %790 = vmatmul.mubr.f32.gmra.mrb[0].mxu0 %v789
  %v791 = vpop.f32.mrb[0].mxu0
  %v792 = vadd.f32 %v687, %v791
  %v793 = vpop.f32.mrb[0].mxu0
  %794 = vmatprep.mubr.f32.mxu0 0.0
  %v795 = vand.u32 %v708, 4294901760
  %v796 = vsub.f32 %v708, %v795
  %v797 = vand.u32 %v796, 4294901760
  %v798 = vsub.f32 %v796, %v797
  %v799 = vand.u32 %v798, 4294901760
  %800 = vmatmul.mubr.f32.gmra.mrb[0].mxu0 %v799
  %v801 = vpop.f32.mrb[0].mxu0
  %v802 = vadd.f32 %v692, %v801
  %v803 = vpop.f32.mrb[0].mxu0
  %804 = vmatprep.mubr.f32.mxu0 0.0
  %v805 = vand.u32 %v711, 4294901760
  %v806 = vsub.f32 %v711, %v805
  %v807 = vand.u32 %v806, 4294901760
  %v808 = vsub.f32 %v806, %v807
  %v809 = vand.u32 %v808, 4294901760
  %810 = vmatmul.mubr.f32.gmra.mrb[0].mxu0 %v809
  %v811 = vpop.f32.mrb[0].mxu0
  %v812 = vadd.f32 %v697, %v811
  %v813 = vpop.f32.mrb[0].mxu0
  %814 = vmatprep.mubr.f32.mxu0 0.0
  %v815 = vand.u32 %v714, 4294901760
  %v816 = vsub.f32 %v714, %v815
  %v817 = vand.u32 %v816, 4294901760
  %v818 = vsub.f32 %v816, %v817
  %v819 = vand.u32 %v818, 4294901760
  %820 = vmatmul.mubr.f32.gmra.mrb[0].mxu0 %v819
  %v821 = vpop.f32.mrb[0].mxu0
  %v822 = vadd.f32 %v702, %v821
  %v823 = vpop.f32.mrb[0].mxu0
  %824 = vdwg.mxu0
  %825 = vmatprep.subr.mxu0 0.0
  %v826 = vand.u32 %v672, 4294901760
  %v827 = vsub.f32 %v672, %v826
  %v828 = vand.u32 %v827, 4294901760
  %v829 = vsub.f32 %v827, %v828
  %v830 = vand.u32 %v829, 4294901760
  %831 = vmatpush1.msra.mxu0 %v830
  %832 = vmatprep.subr.mxu0 0.0
  %v833 = vand.u32 %v673, 4294901760
  %v834 = vsub.f32 %v673, %v833
  %v835 = vand.u32 %v834, 4294901760
  %v836 = vsub.f32 %v834, %v835
  %v837 = vand.u32 %v836, 4294901760
  %838 = vmatpush1.msra.mxu0 %v837
  %839 = vmatprep.subr.mxu0 0.0
  %v840 = vand.u32 %v674, 4294901760
  %v841 = vsub.f32 %v674, %v840
  %v842 = vand.u32 %v841, 4294901760
  %v843 = vsub.f32 %v841, %v842
  %v844 = vand.u32 %v843, 4294901760
  %845 = vmatpush1.msra.mxu0 %v844
  %846 = vmatprep.subr.mxu0 0.0
  %v847 = vand.u32 %v675, 4294901760
  %v848 = vsub.f32 %v675, %v847
  %v849 = vand.u32 %v848, 4294901760
  %v850 = vsub.f32 %v848, %v849
  %v851 = vand.u32 %v850, 4294901760
  %852 = vmatpush1.msra.mxu0 %v851
  %853 = vmatprep.subr.mxu0 0.0
  %854 = vmatpush1.msra.mxu0 0.0
  %855 = vmatprep.subr.mxu0 0.0
  %856 = vmatpush1.msra.mxu0 0.0
  %857 = vmatprep.subr.mxu0 0.0
  %858 = vmatpush1.msra.mxu0 0.0
  %859 = vmatprep.subr.mxu0 0.0
  %860 = vmatpush1.msra.mxu0 0.0
  %861 = vmatprep.subr.mxu0 0.0
  %862 = vmatpush1.msra.mxu0 0.0
  %863 = vmatprep.subr.mxu0 0.0
  %864 = vmatpush1.msra.mxu0 0.0
  %865 = vmatprep.subr.mxu0 0.0
  %866 = vmatpush1.msra.mxu0 0.0
  %867 = vmatprep.subr.mxu0 0.0
  %868 = vmatpush1.msra.mxu0 0.0
  %869 = vmatprep.subr.mxu0 0.0
  %870 = vmatpush1.msra.mxu0 0.0
  %871 = vmatprep.subr.mxu0 0.0
  %872 = vmatpush1.msra.mxu0 0.0
  %873 = vmatprep.subr.mxu0 0.0
  %874 = vmatpush1.msra.mxu0 0.0
  %875 = vmatprep.subr.mxu0 0.0
  %876 = vmatpush1.msra.mxu0 0.0
  %877 = vmatprep.subr.mxu0 0.0
  %878 = vmatpush1.msra.mxu0 0.0
  %879 = vmatprep.subr.mxu0 0.0
  %880 = vmatpush1.msra.mxu0 0.0
  %881 = vmatprep.subr.mxu0 0.0
  %882 = vmatpush1.msra.mxu0 0.0
  %883 = vmatprep.subr.mxu0 0.0
  %884 = vmatpush1.msra.mxu0 0.0
  %885 = vmatprep.subr.mxu0 0.0
  %886 = vmatpush1.msra.mxu0 0.0
  %887 = vmatprep.subr.mxu0 0.0
  %888 = vmatpush1.msra.mxu0 0.0
  %889 = vmatprep.subr.mxu0 0.0
  %890 = vmatpush1.msra.mxu0 0.0
  %891 = vmatprep.subr.mxu0 0.0
  %892 = vmatpush1.msra.mxu0 0.0
  %893 = vmatprep.subr.mxu0 0.0
  %894 = vmatpush1.msra.mxu0 0.0
  %895 = vmatprep.subr.mxu0 0.0
  %896 = vmatpush1.msra.mxu0 0.0
  %897 = vmatprep.subr.mxu0 0.0
  %898 = vmatpush1.msra.mxu0 0.0
  %899 = vmatprep.subr.mxu0 0.0
  %900 = vmatpush1.msra.mxu0 0.0
  %901 = vmatprep.subr.mxu0 0.0
  %902 = vmatpush1.msra.mxu0 0.0
  %903 = vmatprep.subr.mxu0 0.0
  %904 = vmatpush1.msra.mxu0 0.0
  %905 = vmatprep.subr.mxu0 0.0
  %906 = vmatpush1.msra.mxu0 0.0
  %907 = vmatprep.subr.mxu0 0.0
  %908 = vmatpush1.msra.mxu0 0.0
  %909 = vmatprep.mubr.f32.mxu0 0.0
  %v910 = vand.u32 %v705, 4294901760
  %911 = vmatmul.mubr.f32.gmra.mrb[0].mxu0 %v910
  %v912 = vpop.f32.mrb[0].mxu0
  %v913 = vadd.f32 %v792, %v912
  %v914 = vpop.f32.mrb[0].mxu0
  %915 = vmatprep.mubr.f32.mxu0 0.0
  %v916 = vand.u32 %v708, 4294901760
  %917 = vmatmul.mubr.f32.gmra.mrb[0].mxu0 %v916
  %v918 = vpop.f32.mrb[0].mxu0
  %v919 = vadd.f32 %v802, %v918
  %v920 = vpop.f32.mrb[0].mxu0
  %921 = vmatprep.mubr.f32.mxu0 0.0
  %v922 = vand.u32 %v711, 4294901760
  %923 = vmatmul.mubr.f32.gmra.mrb[0].mxu0 %v922
  %v924 = vpop.f32.mrb[0].mxu0
  %v925 = vadd.f32 %v812, %v924
  %v926 = vpop.f32.mrb[0].mxu0
  %927 = vmatprep.mubr.f32.mxu0 0.0
  %v928 = vand.u32 %v714, 4294901760
  %929 = vmatmul.mubr.f32.gmra.mrb[0].mxu0 %v928
  %v930 = vpop.f32.mrb[0].mxu0
  %v931 = vadd.f32 %v822, %v930
  %v932 = vpop.f32.mrb[0].mxu0
  %933 = vdwg.mxu0
  %934 = vmatprep.subr.mxu0 0.0
  %v935 = vand.u32 %v672, 4294901760
  %v936 = vsub.f32 %v672, %v935
  %937 = vmatpush1.msra.mxu0 %v936
  %938 = vmatprep.subr.mxu0 0.0
  %v939 = vand.u32 %v673, 4294901760
  %v940 = vsub.f32 %v673, %v939
  %941 = vmatpush1.msra.mxu0 %v940
  %942 = vmatprep.subr.mxu0 0.0
  %v943 = vand.u32 %v674, 4294901760
  %v944 = vsub.f32 %v674, %v943
  %945 = vmatpush1.msra.mxu0 %v944
  %946 = vmatprep.subr.mxu0 0.0
  %v947 = vand.u32 %v675, 4294901760
  %v948 = vsub.f32 %v675, %v947
  %949 = vmatpush1.msra.mxu0 %v948
  %950 = vmatprep.subr.mxu0 0.0
  %951 = vmatpush1.msra.mxu0 0.0
  %952 = vmatprep.subr.mxu0 0.0
  %953 = vmatpush1.msra.mxu0 0.0
  %954 = vmatprep.subr.mxu0 0.0
  %955 = vmatpush1.msra.mxu0 0.0
  %956 = vmatprep.subr.mxu0 0.0
  %957 = vmatpush1.msra.mxu0 0.0
  %958 = vmatprep.subr.mxu0 0.0
  %959 = vmatpush1.msra.mxu0 0.0
  %960 = vmatprep.subr.mxu0 0.0
  %961 = vmatpush1.msra.mxu0 0.0
  %962 = vmatprep.subr.mxu0 0.0
  %963 = vmatpush1.msra.mxu0 0.0
  %964 = vmatprep.subr.mxu0 0.0
  %965 = vmatpush1.msra.mxu0 0.0
  %966 = vmatprep.subr.mxu0 0.0
  %967 = vmatpush1.msra.mxu0 0.0
  %968 = vmatprep.subr.mxu0 0.0
  %969 = vmatpush1.msra.mxu0 0.0
  %970 = vmatprep.subr.mxu0 0.0
  %971 = vmatpush1.msra.mxu0 0.0
  %972 = vmatprep.subr.mxu0 0.0
  %973 = vmatpush1.msra.mxu0 0.0
  %974 = vmatprep.subr.mxu0 0.0
  %975 = vmatpush1.msra.mxu0 0.0
  %976 = vmatprep.subr.mxu0 0.0
  %977 = vmatpush1.msra.mxu0 0.0
  %978 = vmatprep.subr.mxu0 0.0
  %979 = vmatpush1.msra.mxu0 0.0
  %980 = vmatprep.subr.mxu0 0.0
  %981 = vmatpush1.msra.mxu0 0.0
  %982 = vmatprep.subr.mxu0 0.0
  %983 = vmatpush1.msra.mxu0 0.0
  %984 = vmatprep.subr.mxu0 0.0
  %985 = vmatpush1.msra.mxu0 0.0
  %986 = vmatprep.subr.mxu0 0.0
  %987 = vmatpush1.msra.mxu0 0.0
  %988 = vmatprep.subr.mxu0 0.0
  %989 = vmatpush1.msra.mxu0 0.0
  %990 = vmatprep.subr.mxu0 0.0
  %991 = vmatpush1.msra.mxu0 0.0
  %992 = vmatprep.subr.mxu0 0.0
  %993 = vmatpush1.msra.mxu0 0.0
  %994 = vmatprep.subr.mxu0 0.0
  %995 = vmatpush1.msra.mxu0 0.0
  %996 = vmatprep.subr.mxu0 0.0
  %997 = vmatpush1.msra.mxu0 0.0
  %998 = vmatprep.subr.mxu0 0.0
  %999 = vmatpush1.msra.mxu0 0.0
  %1000 = vmatprep.subr.mxu0 0.0
  %1001 = vmatpush1.msra.mxu0 0.0
  %1002 = vmatprep.subr.mxu0 0.0
  %1003 = vmatpush1.msra.mxu0 0.0
  %1004 = vmatprep.subr.mxu0 0.0
  %1005 = vmatpush1.msra.mxu0 0.0
  %1006 = vmatprep.mubr.f32.mxu0 0.0
  %v1007 = vand.u32 %v705, 4294901760
  %v1008 = vsub.f32 %v705, %v1007
  %1009 = vmatmul.mubr.f32.gmra.mrb[0].mxu0 %v1008
  %v1010 = vpop.f32.mrb[0].mxu0
  %v1011 = vadd.f32 %v913, %v1010
  %v1012 = vpop.f32.mrb[0].mxu0
  %1013 = vmatprep.mubr.f32.mxu0 0.0
  %v1014 = vand.u32 %v708, 4294901760
  %v1015 = vsub.f32 %v708, %v1014
  %1016 = vmatmul.mubr.f32.gmra.mrb[0].mxu0 %v1015
  %v1017 = vpop.f32.mrb[0].mxu0
  %v1018 = vadd.f32 %v919, %v1017
  %v1019 = vpop.f32.mrb[0].mxu0
  %1020 = vmatprep.mubr.f32.mxu0 0.0
  %v1021 = vand.u32 %v711, 4294901760
  %v1022 = vsub.f32 %v711, %v1021
  %1023 = vmatmul.mubr.f32.gmra.mrb[0].mxu0 %v1022
  %v1024 = vpop.f32.mrb[0].mxu0
  %v1025 = vadd.f32 %v925, %v1024
  %v1026 = vpop.f32.mrb[0].mxu0
  %1027 = vmatprep.mubr.f32.mxu0 0.0
  %v1028 = vand.u32 %v714, 4294901760
  %v1029 = vsub.f32 %v714, %v1028
  %1030 = vmatmul.mubr.f32.gmra.mrb[0].mxu0 %v1029
  %v1031 = vpop.f32.mrb[0].mxu0
  %v1032 = vadd.f32 %v931, %v1031
  %v1033 = vpop.f32.mrb[0].mxu0
  %1034 = vdwg.mxu0
  %1035 = vmatprep.subr.mxu0 0.0
  %v1036 = vand.u32 %v672, 4294901760
  %1037 = vmatpush1.msra.mxu0 %v1036
  %1038 = vmatprep.subr.mxu0 0.0
  %v1039 = vand.u32 %v673, 4294901760
  %1040 = vmatpush1.msra.mxu0 %v1039
  %1041 = vmatprep.subr.mxu0 0.0
  %v1042 = vand.u32 %v674, 4294901760
  %1043 = vmatpush1.msra.mxu0 %v1042
  %1044 = vmatprep.subr.mxu0 0.0
  %v1045 = vand.u32 %v675, 4294901760
  %1046 = vmatpush1.msra.mxu0 %v1045
  %1047 = vmatprep.subr.mxu0 0.0
  %1048 = vmatpush1.msra.mxu0 0.0
  %1049 = vmatprep.subr.mxu0 0.0
  %1050 = vmatpush1.msra.mxu0 0.0
  %1051 = vmatprep.subr.mxu0 0.0
  %1052 = vmatpush1.msra.mxu0 0.0
  %1053 = vmatprep.subr.mxu0 0.0
  %1054 = vmatpush1.msra.mxu0 0.0
  %1055 = vmatprep.subr.mxu0 0.0
  %1056 = vmatpush1.msra.mxu0 0.0
  %1057 = vmatprep.subr.mxu0 0.0
  %1058 = vmatpush1.msra.mxu0 0.0
  %1059 = vmatprep.subr.mxu0 0.0
  %1060 = vmatpush1.msra.mxu0 0.0
  %1061 = vmatprep.subr.mxu0 0.0
  %1062 = vmatpush1.msra.mxu0 0.0
  %1063 = vmatprep.subr.mxu0 0.0
  %1064 = vmatpush1.msra.mxu0 0.0
  %1065 = vmatprep.subr.mxu0 0.0
  %1066 = vmatpush1.msra.mxu0 0.0
  %1067 = vmatprep.subr.mxu0 0.0
  %1068 = vmatpush1.msra.mxu0 0.0
  %1069 = vmatprep.subr.mxu0 0.0
  %1070 = vmatpush1.msra.mxu0 0.0
  %1071 = vmatprep.subr.mxu0 0.0
  %1072 = vmatpush1.msra.mxu0 0.0
  %1073 = vmatprep.subr.mxu0 0.0
  %1074 = vmatpush1.msra.mxu0 0.0
  %1075 = vmatprep.subr.mxu0 0.0
  %1076 = vmatpush1.msra.mxu0 0.0
  %1077 = vmatprep.subr.mxu0 0.0
  %1078 = vmatpush1.msra.mxu0 0.0
  %1079 = vmatprep.subr.mxu0 0.0
  %1080 = vmatpush1.msra.mxu0 0.0
  %1081 = vmatprep.subr.mxu0 0.0
  %1082 = vmatpush1.msra.mxu0 0.0
  %1083 = vmatprep.subr.mxu0 0.0
  %1084 = vmatpush1.msra.mxu0 0.0
  %1085 = vmatprep.subr.mxu0 0.0
  %1086 = vmatpush1.msra.mxu0 0.0
  %1087 = vmatprep.subr.mxu0 0.0
  %1088 = vmatpush1.msra.mxu0 0.0
  %1089 = vmatprep.subr.mxu0 0.0
  %1090 = vmatpush1.msra.mxu0 0.0
  %1091 = vmatprep.subr.mxu0 0.0
  %1092 = vmatpush1.msra.mxu0 0.0
  %1093 = vmatprep.subr.mxu0 0.0
  %1094 = vmatpush1.msra.mxu0 0.0
  %1095 = vmatprep.subr.mxu0 0.0
  %1096 = vmatpush1.msra.mxu0 0.0
  %1097 = vmatprep.subr.mxu0 0.0
  %1098 = vmatpush1.msra.mxu0 0.0
  %1099 = vmatprep.subr.mxu0 0.0
  %1100 = vmatpush1.msra.mxu0 0.0
  %1101 = vmatprep.subr.mxu0 0.0
  %1102 = vmatpush1.msra.mxu0 0.0
  %1103 = vmatprep.mubr.f32.mxu0 0.0
  %v1104 = vand.u32 %v705, 4294901760
  %v1105 = vsub.f32 %v705, %v1104
  %v1106 = vand.u32 %v1105, 4294901760
  %1107 = vmatmul.mubr.f32.gmra.mrb[0].mxu0 %v1106
  %v1108 = vpop.f32.mrb[0].mxu0
  %v1109 = vadd.f32 %v1011, %v1108
  %v1110 = vpop.f32.mrb[0].mxu0
  %1111 = vmatprep.mubr.f32.mxu0 0.0
  %v1112 = vand.u32 %v708, 4294901760
  %v1113 = vsub.f32 %v708, %v1112
  %v1114 = vand.u32 %v1113, 4294901760
  %1115 = vmatmul.mubr.f32.gmra.mrb[0].mxu0 %v1114
  %v1116 = vpop.f32.mrb[0].mxu0
  %v1117 = vadd.f32 %v1018, %v1116
  %v1118 = vpop.f32.mrb[0].mxu0
  %1119 = vmatprep.mubr.f32.mxu0 0.0
  %v1120 = vand.u32 %v711, 4294901760
  %v1121 = vsub.f32 %v711, %v1120
  %v1122 = vand.u32 %v1121, 4294901760
  %1123 = vmatmul.mubr.f32.gmra.mrb[0].mxu0 %v1122
  %v1124 = vpop.f32.mrb[0].mxu0
  %v1125 = vadd.f32 %v1025, %v1124
  %v1126 = vpop.f32.mrb[0].mxu0
  %1127 = vmatprep.mubr.f32.mxu0 0.0
  %v1128 = vand.u32 %v714, 4294901760
  %v1129 = vsub.f32 %v714, %v1128
  %v1130 = vand.u32 %v1129, 4294901760
  %1131 = vmatmul.mubr.f32.gmra.mrb[0].mxu0 %v1130
  %v1132 = vpop.f32.mrb[0].mxu0
  %v1133 = vadd.f32 %v1032, %v1132
  %v1134 = vpop.f32.mrb[0].mxu0
  %1135 = vdwg.mxu0
  %1136 = vmatprep.subr.mxu0 0.0
  %v1137 = vand.u32 %v672, 4294901760
  %v1138 = vsub.f32 %v672, %v1137
  %v1139 = vand.u32 %v1138, 4294901760
  %1140 = vmatpush1.msra.mxu0 %v1139
  %1141 = vmatprep.subr.mxu0 0.0
  %v1142 = vand.u32 %v673, 4294901760
  %v1143 = vsub.f32 %v673, %v1142
  %v1144 = vand.u32 %v1143, 4294901760
  %1145 = vmatpush1.msra.mxu0 %v1144
  %1146 = vmatprep.subr.mxu0 0.0
  %v1147 = vand.u32 %v674, 4294901760
  %v1148 = vsub.f32 %v674, %v1147
  %v1149 = vand.u32 %v1148, 4294901760
  %1150 = vmatpush1.msra.mxu0 %v1149
  %1151 = vmatprep.subr.mxu0 0.0
  %v1152 = vand.u32 %v675, 4294901760
  %v1153 = vsub.f32 %v675, %v1152
  %v1154 = vand.u32 %v1153, 4294901760
  %1155 = vmatpush1.msra.mxu0 %v1154
  %1156 = vmatprep.subr.mxu0 0.0
  %1157 = vmatpush1.msra.mxu0 0.0
  %1158 = vmatprep.subr.mxu0 0.0
  %1159 = vmatpush1.msra.mxu0 0.0
  %1160 = vmatprep.subr.mxu0 0.0
  %1161 = vmatpush1.msra.mxu0 0.0
  %1162 = vmatprep.subr.mxu0 0.0
  %1163 = vmatpush1.msra.mxu0 0.0
  %1164 = vmatprep.subr.mxu0 0.0
  %1165 = vmatpush1.msra.mxu0 0.0
  %1166 = vmatprep.subr.mxu0 0.0
  %1167 = vmatpush1.msra.mxu0 0.0
  %1168 = vmatprep.subr.mxu0 0.0
  %1169 = vmatpush1.msra.mxu0 0.0
  %1170 = vmatprep.subr.mxu0 0.0
  %1171 = vmatpush1.msra.mxu0 0.0
  %1172 = vmatprep.subr.mxu0 0.0
  %1173 = vmatpush1.msra.mxu0 0.0
  %1174 = vmatprep.subr.mxu0 0.0
  %1175 = vmatpush1.msra.mxu0 0.0
  %1176 = vmatprep.subr.mxu0 0.0
  %1177 = vmatpush1.msra.mxu0 0.0
  %1178 = vmatprep.subr.mxu0 0.0
  %1179 = vmatpush1.msra.mxu0 0.0
  %1180 = vmatprep.subr.mxu0 0.0
  %1181 = vmatpush1.msra.mxu0 0.0
  %1182 = vmatprep.subr.mxu0 0.0
  %1183 = vmatpush1.msra.mxu0 0.0
  %1184 = vmatprep.subr.mxu0 0.0
  %1185 = vmatpush1.msra.mxu0 0.0
  %1186 = vmatprep.subr.mxu0 0.0
  %1187 = vmatpush1.msra.mxu0 0.0
  %1188 = vmatprep.subr.mxu0 0.0
  %1189 = vmatpush1.msra.mxu0 0.0
  %1190 = vmatprep.subr.mxu0 0.0
  %1191 = vmatpush1.msra.mxu0 0.0
  %1192 = vmatprep.subr.mxu0 0.0
  %1193 = vmatpush1.msra.mxu0 0.0
  %1194 = vmatprep.subr.mxu0 0.0
  %1195 = vmatpush1.msra.mxu0 0.0
  %1196 = vmatprep.subr.mxu0 0.0
  %1197 = vmatpush1.msra.mxu0 0.0
  %1198 = vmatprep.subr.mxu0 0.0
  %1199 = vmatpush1.msra.mxu0 0.0
  %1200 = vmatprep.subr.mxu0 0.0
  %1201 = vmatpush1.msra.mxu0 0.0
  %1202 = vmatprep.subr.mxu0 0.0
  %1203 = vmatpush1.msra.mxu0 0.0
  %1204 = vmatprep.subr.mxu0 0.0
  %1205 = vmatpush1.msra.mxu0 0.0
  %1206 = vmatprep.subr.mxu0 0.0
  %1207 = vmatpush1.msra.mxu0 0.0
  %1208 = vmatprep.subr.mxu0 0.0
  %1209 = vmatpush1.msra.mxu0 0.0
  %1210 = vmatprep.subr.mxu0 0.0
  %1211 = vmatpush1.msra.mxu0 0.0
  %1212 = vmatprep.mubr.f32.mxu0 0.0
  %v1213 = vand.u32 %v705, 4294901760
  %1214 = vmatmul.mubr.f32.gmra.mrb[0].mxu0 %v1213
  %v1215 = vpop.f32.mrb[0].mxu0
  %v1216 = vadd.f32 %v1109, %v1215
  %v1217 = vpop.f32.mrb[0].mxu0
  %1218 = vmatprep.mubr.f32.mxu0 0.0
  %v1219 = vand.u32 %v708, 4294901760
  %1220 = vmatmul.mubr.f32.gmra.mrb[0].mxu0 %v1219
  %v1221 = vpop.f32.mrb[0].mxu0
  %v1222 = vadd.f32 %v1117, %v1221
  %v1223 = vpop.f32.mrb[0].mxu0
  %1224 = vmatprep.mubr.f32.mxu0 0.0
  %v1225 = vand.u32 %v711, 4294901760
  %1226 = vmatmul.mubr.f32.gmra.mrb[0].mxu0 %v1225
  %v1227 = vpop.f32.mrb[0].mxu0
  %v1228 = vadd.f32 %v1125, %v1227
  %v1229 = vpop.f32.mrb[0].mxu0
  %1230 = vmatprep.mubr.f32.mxu0 0.0
  %v1231 = vand.u32 %v714, 4294901760
  %1232 = vmatmul.mubr.f32.gmra.mrb[0].mxu0 %v1231
  %v1233 = vpop.f32.mrb[0].mxu0
  %v1234 = vadd.f32 %v1133, %v1233
  %v1235 = vpop.f32.mrb[0].mxu0
  %1236 = vdwg.mxu0
  %1237 = vmatprep.subr.mxu0 0.0
  %v1238 = vand.u32 %v672, 4294901760
  %1239 = vmatpush1.msra.mxu0 %v1238
  %1240 = vmatprep.subr.mxu0 0.0
  %v1241 = vand.u32 %v673, 4294901760
  %1242 = vmatpush1.msra.mxu0 %v1241
  %1243 = vmatprep.subr.mxu0 0.0
  %v1244 = vand.u32 %v674, 4294901760
  %1245 = vmatpush1.msra.mxu0 %v1244
  %1246 = vmatprep.subr.mxu0 0.0
  %v1247 = vand.u32 %v675, 4294901760
  %1248 = vmatpush1.msra.mxu0 %v1247
  %1249 = vmatprep.subr.mxu0 0.0
  %1250 = vmatpush1.msra.mxu0 0.0
  %1251 = vmatprep.subr.mxu0 0.0
  %1252 = vmatpush1.msra.mxu0 0.0
  %1253 = vmatprep.subr.mxu0 0.0
  %1254 = vmatpush1.msra.mxu0 0.0
  %1255 = vmatprep.subr.mxu0 0.0
  %1256 = vmatpush1.msra.mxu0 0.0
  %1257 = vmatprep.subr.mxu0 0.0
  %1258 = vmatpush1.msra.mxu0 0.0
  %1259 = vmatprep.subr.mxu0 0.0
  %1260 = vmatpush1.msra.mxu0 0.0
  %1261 = vmatprep.subr.mxu0 0.0
  %1262 = vmatpush1.msra.mxu0 0.0
  %1263 = vmatprep.subr.mxu0 0.0
  %1264 = vmatpush1.msra.mxu0 0.0
  %1265 = vmatprep.subr.mxu0 0.0
  %1266 = vmatpush1.msra.mxu0 0.0
  %1267 = vmatprep.subr.mxu0 0.0
  %1268 = vmatpush1.msra.mxu0 0.0
  %1269 = vmatprep.subr.mxu0 0.0
  %1270 = vmatpush1.msra.mxu0 0.0
  %1271 = vmatprep.subr.mxu0 0.0
  %1272 = vmatpush1.msra.mxu0 0.0
  %1273 = vmatprep.subr.mxu0 0.0
  %1274 = vmatpush1.msra.mxu0 0.0
  %1275 = vmatprep.subr.mxu0 0.0
  %1276 = vmatpush1.msra.mxu0 0.0
  %1277 = vmatprep.subr.mxu0 0.0
  %1278 = vmatpush1.msra.mxu0 0.0
  %1279 = vmatprep.subr.mxu0 0.0
  %1280 = vmatpush1.msra.mxu0 0.0
  %1281 = vmatprep.subr.mxu0 0.0
  %1282 = vmatpush1.msra.mxu0 0.0
  %1283 = vmatprep.subr.mxu0 0.0
  %1284 = vmatpush1.msra.mxu0 0.0
  %1285 = vmatprep.subr.mxu0 0.0
  %1286 = vmatpush1.msra.mxu0 0.0
  %1287 = vmatprep.subr.mxu0 0.0
  %1288 = vmatpush1.msra.mxu0 0.0
  %1289 = vmatprep.subr.mxu0 0.0
  %1290 = vmatpush1.msra.mxu0 0.0
  %1291 = vmatprep.subr.mxu0 0.0
  %1292 = vmatpush1.msra.mxu0 0.0
  %1293 = vmatprep.subr.mxu0 0.0
  %1294 = vmatpush1.msra.mxu0 0.0
  %1295 = vmatprep.subr.mxu0 0.0
  %1296 = vmatpush1.msra.mxu0 0.0
  %1297 = vmatprep.subr.mxu0 0.0
  %1298 = vmatpush1.msra.mxu0 0.0
  %1299 = vmatprep.subr.mxu0 0.0
  %1300 = vmatpush1.msra.mxu0 0.0
  %1301 = vmatprep.subr.mxu0 0.0
  %1302 = vmatpush1.msra.mxu0 0.0
  %1303 = vmatprep.subr.mxu0 0.0
  %1304 = vmatpush1.msra.mxu0 0.0
  %1305 = vmatprep.mubr.f32.mxu0 0.0
  %v1306 = vand.u32 %v705, 4294901760
  %1307 = vmatmul.mubr.f32.gmra.mrb[0].mxu0 %v1306
  %v1308 = vpop.f32.mrb[0].mxu0
  %v1309 = vadd.f32 %v1216, %v1308
  %v1310 = vpop.f32.mrb[0].mxu0
  %1311 = vmatprep.mubr.f32.mxu0 0.0
  %v1312 = vand.u32 %v708, 4294901760
  %1313 = vmatmul.mubr.f32.gmra.mrb[0].mxu0 %v1312
  %v1314 = vpop.f32.mrb[0].mxu0
  %v1315 = vadd.f32 %v1222, %v1314
  %v1316 = vpop.f32.mrb[0].mxu0
  %1317 = vmatprep.mubr.f32.mxu0 0.0
  %v1318 = vand.u32 %v711, 4294901760
  %1319 = vmatmul.mubr.f32.gmra.mrb[0].mxu0 %v1318
  %v1320 = vpop.f32.mrb[0].mxu0
  %v1321 = vadd.f32 %v1228, %v1320
  %v1322 = vpop.f32.mrb[0].mxu0
  %1323 = vmatprep.mubr.f32.mxu0 0.0
  %v1324 = vand.u32 %v714, 4294901760
  %1325 = vmatmul.mubr.f32.gmra.mrb[0].mxu0 %v1324
  %v1326 = vpop.f32.mrb[0].mxu0
  %v1327 = vadd.f32 %v1234, %v1326
  %v1328 = vpop.f32.mrb[0].mxu0
  %1329 = vdwg.mxu0
  %v1330 = vtanh.pop %v1309
  %v1331 = vtanh.pop %v1315
  %v1332 = vtanh.pop %v1321
  %v1333 = vtanh.pop %v1327
  %1334 = vxpose.xlu0.b32.start [1/16] %v1330, 128
  %1335 = vxpose.xlu0.b32.cont [2/16] %v1331, 128
  %1336 = vxpose.xlu0.b32.cont [3/16] %v1332, 128
  %1337 = vxpose.xlu0.b32.cont [4/16] %v1333, 128
  %1338 = vxpose.xlu0.b32.cont [5/16] 0.0, 128
  %1339 = vxpose.xlu0.b32.cont [6/16] 0.0, 128
  %1340 = vxpose.xlu0.b32.cont [7/16] 0.0, 128
  %1341 = vxpose.xlu0.b32.cont [8/16] 0.0, 128
  %1342 = vxpose.xlu0.b32.cont [9/16] 0.0, 128
  %1343 = vxpose.xlu0.b32.cont [10/16] 0.0, 128
  %1344 = vxpose.xlu0.b32.cont [11/16] 0.0, 128
  %1345 = vxpose.xlu0.b32.cont [12/16] 0.0, 128
  %1346 = vxpose.xlu0.b32.cont [13/16] 0.0, 128
  %1347 = vxpose.xlu0.b32.cont [14/16] 0.0, 128
  %1348 = vxpose.xlu0.b32.cont [15/16] 0.0, 128
  %1349 = vxpose.xlu0.b32.end [16/16] 0.0, 128
  %v1350 = vpop.trf.xlu0
  %v1351 = vpop.trf.xlu0
  %v1352 = vpop.trf.xlu0
  %v1353 = vpop.trf.xlu0
  %v1354 = vpop.trf.xlu0
  %v1355 = vpop.trf.xlu0
  %v1356 = vpop.trf.xlu0
  %v1357 = vpop.trf.xlu0
  %v1358 = vpop.trf.xlu0
  %v1359 = vpop.trf.xlu0
  %v1360 = vpop.trf.xlu0
  %v1361 = vpop.trf.xlu0
  %v1362 = vpop.trf.xlu0
  %v1363 = vpop.trf.xlu0
  %v1364 = vpop.trf.xlu0
  %v1365 = vpop.trf.xlu0
  %1366 = vrot.lane.b32.xlu0 %v676, 127
  %v1367 = vpop.permute.xlu0 %1366
  %1368 = vrot.lane.b32.xlu0 %v677, 127
  %v1369 = vpop.permute.xlu0 %1368
  %1370 = vrot.lane.b32.xlu0 %v678, 127
  %v1371 = vpop.permute.xlu0 %1370
  %1372 = vrot.lane.b32.xlu0 %v679, 127
  %v1373 = vpop.permute.xlu0 %1372
  %v1379 = vsel %vm69, %v1350, 0
  %v1382 = vsel %vm69, %v1351, 0
  %v1385 = vsel %vm69, %v1352, 0
  %v1388 = vsel %vm69, %v1353, 0
  %v1391 = vsel %vm69, %v1354, 0
  %v1394 = vsel %vm69, %v1355, 0
  %v1397 = vsel %vm69, %v1356, 0
  %v1400 = vsel %vm69, %v1357, 0
  %v1403 = vsel %vm69, %v1358, 0
  %v1406 = vsel %vm69, %v1359, 0
  %v1409 = vsel %vm69, %v1360, 0
  %v1412 = vsel %vm69, %v1361, 0
  %v1415 = vsel %vm69, %v1362, 0
  %v1418 = vsel %vm69, %v1363, 0
  %v1421 = vsel %vm69, %v1364, 0
  %v1424 = vsel %vm69, %v1365, 0
  %1426 = vmatprep.subr.mxu0 0.0
  %v1427 = vand.u32 %v1367, 4294901760
  %1428 = vmatpush1.msra.mxu0 %v1427
  %1429 = vmatprep.subr.mxu0 0.0
  %v1430 = vand.u32 %v1369, 4294901760
  %1431 = vmatpush1.msra.mxu0 %v1430
  %1432 = vmatprep.subr.mxu0 0.0
  %v1433 = vand.u32 %v1371, 4294901760
  %1434 = vmatpush1.msra.mxu0 %v1433
  %1435 = vmatprep.subr.mxu0 0.0
  %v1436 = vand.u32 %v1373, 4294901760
  %1437 = vmatpush1.msra.mxu0 %v1436
  %1438 = vmatprep.subr.mxu0 0.0
  %1439 = vmatpush1.msra.mxu0 0.0
  %1440 = vmatprep.subr.mxu0 0.0
  %1441 = vmatpush1.msra.mxu0 0.0
  %1442 = vmatprep.subr.mxu0 0.0
  %1443 = vmatpush1.msra.mxu0 0.0
  %1444 = vmatprep.subr.mxu0 0.0
  %1445 = vmatpush1.msra.mxu0 0.0
  %1446 = vmatprep.subr.mxu0 0.0
  %1447 = vmatpush1.msra.mxu0 0.0
  %1448 = vmatprep.subr.mxu0 0.0
  %1449 = vmatpush1.msra.mxu0 0.0
  %1450 = vmatprep.subr.mxu0 0.0
  %1451 = vmatpush1.msra.mxu0 0.0
  %1452 = vmatprep.subr.mxu0 0.0
  %1453 = vmatpush1.msra.mxu0 0.0
  %1454 = vmatprep.subr.mxu0 0.0
  %1455 = vmatpush1.msra.mxu0 0.0
  %1456 = vmatprep.subr.mxu0 0.0
  %1457 = vmatpush1.msra.mxu0 0.0
  %1458 = vmatprep.subr.mxu0 0.0
  %1459 = vmatpush1.msra.mxu0 0.0
  %1460 = vmatprep.subr.mxu0 0.0
  %1461 = vmatpush1.msra.mxu0 0.0
  %1462 = vmatprep.subr.mxu0 0.0
  %1463 = vmatpush1.msra.mxu0 0.0
  %1464 = vmatprep.subr.mxu0 0.0
  %1465 = vmatpush1.msra.mxu0 0.0
  %1466 = vmatprep.subr.mxu0 0.0
  %1467 = vmatpush1.msra.mxu0 0.0
  %1468 = vmatprep.subr.mxu0 0.0
  %1469 = vmatpush1.msra.mxu0 0.0
  %1470 = vmatprep.subr.mxu0 0.0
  %1471 = vmatpush1.msra.mxu0 0.0
  %1472 = vmatprep.subr.mxu0 0.0
  %1473 = vmatpush1.msra.mxu0 0.0
  %1474 = vmatprep.subr.mxu0 0.0
  %1475 = vmatpush1.msra.mxu0 0.0
  %1476 = vmatprep.subr.mxu0 0.0
  %1477 = vmatpush1.msra.mxu0 0.0
  %1478 = vmatprep.subr.mxu0 0.0
  %1479 = vmatpush1.msra.mxu0 0.0
  %1480 = vmatprep.subr.mxu0 0.0
  %1481 = vmatpush1.msra.mxu0 0.0
  %1482 = vmatprep.subr.mxu0 0.0
  %1483 = vmatpush1.msra.mxu0 0.0
  %1484 = vmatprep.subr.mxu0 0.0
  %1485 = vmatpush1.msra.mxu0 0.0
  %1486 = vmatprep.subr.mxu0 0.0
  %1487 = vmatpush1.msra.mxu0 0.0
  %1488 = vmatprep.subr.mxu0 0.0
  %1489 = vmatpush1.msra.mxu0 0.0
  %1490 = vmatprep.subr.mxu0 0.0
  %1491 = vmatpush1.msra.mxu0 0.0
  %1492 = vmatprep.subr.mxu0 0.0
  %1493 = vmatpush1.msra.mxu0 0.0
  %1494 = vmatprep.mubr.f32.mxu0 0.0
  %v1495 = vand.u32 %v1379, 4294901760
  %v1496 = vsub.f32 %v1379, %v1495
  %v1497 = vand.u32 %v1496, 4294901760
  %v1498 = vsub.f32 %v1496, %v1497
  %v1499 = vand.u32 %v1498, 4294901760
  %1500 = vmatmul.mubr.f32.gmra.mrb[0].mxu0 %v1499
  %v1501 = vpop.f32.mrb[0].mxu0
  %v1502 = vadd.f32 0.0, %v1501
  %v1503 = vpop.f32.mrb[0].mxu0
  %1504 = vmatprep.mubr.f32.mxu0 0.0
  %v1505 = vand.u32 %v1382, 4294901760
  %v1506 = vsub.f32 %v1382, %v1505
  %v1507 = vand.u32 %v1506, 4294901760
  %v1508 = vsub.f32 %v1506, %v1507
  %v1509 = vand.u32 %v1508, 4294901760
  %1510 = vmatmul.mubr.f32.gmra.mrb[0].mxu0 %v1509
  %v1511 = vpop.f32.mrb[0].mxu0
  %v1512 = vadd.f32 0.0, %v1511
  %v1513 = vpop.f32.mrb[0].mxu0
  %1514 = vmatprep.mubr.f32.mxu0 0.0
  %v1515 = vand.u32 %v1385, 4294901760
  %v1516 = vsub.f32 %v1385, %v1515
  %v1517 = vand.u32 %v1516, 4294901760
  %v1518 = vsub.f32 %v1516, %v1517
  %v1519 = vand.u32 %v1518, 4294901760
  %1520 = vmatmul.mubr.f32.gmra.mrb[0].mxu0 %v1519
  %v1521 = vpop.f32.mrb[0].mxu0
  %v1522 = vadd.f32 0.0, %v1521
  %v1523 = vpop.f32.mrb[0].mxu0
  %1524 = vmatprep.mubr.f32.mxu0 0.0
  %v1525 = vand.u32 %v1388, 4294901760
  %v1526 = vsub.f32 %v1388, %v1525
  %v1527 = vand.u32 %v1526, 4294901760
  %v1528 = vsub.f32 %v1526, %v1527
  %v1529 = vand.u32 %v1528, 4294901760
  %1530 = vmatmul.mubr.f32.gmra.mrb[0].mxu0 %v1529
  %v1531 = vpop.f32.mrb[0].mxu0
  %v1532 = vadd.f32 0.0, %v1531
  %v1533 = vpop.f32.mrb[0].mxu0
  %1534 = vmatprep.mubr.f32.mxu0 0.0
  %v1535 = vand.u32 %v1391, 4294901760
  %v1536 = vsub.f32 %v1391, %v1535
  %v1537 = vand.u32 %v1536, 4294901760
  %v1538 = vsub.f32 %v1536, %v1537
  %v1539 = vand.u32 %v1538, 4294901760
  %1540 = vmatmul.mubr.f32.gmra.mrb[0].mxu0 %v1539
  %v1541 = vpop.f32.mrb[0].mxu0
  %v1542 = vadd.f32 0.0, %v1541
  %v1543 = vpop.f32.mrb[0].mxu0
  %1544 = vmatprep.mubr.f32.mxu0 0.0
  %v1545 = vand.u32 %v1394, 4294901760
  %v1546 = vsub.f32 %v1394, %v1545
  %v1547 = vand.u32 %v1546, 4294901760
  %v1548 = vsub.f32 %v1546, %v1547
  %v1549 = vand.u32 %v1548, 4294901760
  %1550 = vmatmul.mubr.f32.gmra.mrb[0].mxu0 %v1549
  %v1551 = vpop.f32.mrb[0].mxu0
  %v1552 = vadd.f32 0.0, %v1551
  %v1553 = vpop.f32.mrb[0].mxu0
  %1554 = vmatprep.mubr.f32.mxu0 0.0
  %v1555 = vand.u32 %v1397, 4294901760
  %v1556 = vsub.f32 %v1397, %v1555
  %v1557 = vand.u32 %v1556, 4294901760
  %v1558 = vsub.f32 %v1556, %v1557
  %v1559 = vand.u32 %v1558, 4294901760
  %1560 = vmatmul.mubr.f32.gmra.mrb[0].mxu0 %v1559
  %v1561 = vpop.f32.mrb[0].mxu0
  %v1562 = vadd.f32 0.0, %v1561
  %v1563 = vpop.f32.mrb[0].mxu0
  %1564 = vmatprep.mubr.f32.mxu0 0.0
  %v1565 = vand.u32 %v1400, 4294901760
  %v1566 = vsub.f32 %v1400, %v1565
  %v1567 = vand.u32 %v1566, 4294901760
  %v1568 = vsub.f32 %v1566, %v1567
  %v1569 = vand.u32 %v1568, 4294901760
  %1570 = vmatmul.mubr.f32.gmra.mrb[0].mxu0 %v1569
  %v1571 = vpop.f32.mrb[0].mxu0
  %v1572 = vadd.f32 0.0, %v1571
  %v1573 = vpop.f32.mrb[0].mxu0
  %1574 = vmatprep.mubr.f32.mxu0 0.0
  %v1575 = vand.u32 %v1403, 4294901760
  %v1576 = vsub.f32 %v1403, %v1575
  %v1577 = vand.u32 %v1576, 4294901760
  %v1578 = vsub.f32 %v1576, %v1577
  %v1579 = vand.u32 %v1578, 4294901760
  %1580 = vmatmul.mubr.f32.gmra.mrb[0].mxu0 %v1579
  %v1581 = vpop.f32.mrb[0].mxu0
  %v1582 = vadd.f32 0.0, %v1581
  %v1583 = vpop.f32.mrb[0].mxu0
  %1584 = vmatprep.mubr.f32.mxu0 0.0
  %v1585 = vand.u32 %v1406, 4294901760
  %v1586 = vsub.f32 %v1406, %v1585
  %v1587 = vand.u32 %v1586, 4294901760
  %v1588 = vsub.f32 %v1586, %v1587
  %v1589 = vand.u32 %v1588, 4294901760
  %1590 = vmatmul.mubr.f32.gmra.mrb[0].mxu0 %v1589
  %v1591 = vpop.f32.mrb[0].mxu0
  %v1592 = vadd.f32 0.0, %v1591
  %v1593 = vpop.f32.mrb[0].mxu0
  %1594 = vmatprep.mubr.f32.mxu0 0.0
  %v1595 = vand.u32 %v1409, 4294901760
  %v1596 = vsub.f32 %v1409, %v1595
  %v1597 = vand.u32 %v1596, 4294901760
  %v1598 = vsub.f32 %v1596, %v1597
  %v1599 = vand.u32 %v1598, 4294901760
  %1600 = vmatmul.mubr.f32.gmra.mrb[0].mxu0 %v1599
  %v1601 = vpop.f32.mrb[0].mxu0
  %v1602 = vadd.f32 0.0, %v1601
  %v1603 = vpop.f32.mrb[0].mxu0
  %1604 = vmatprep.mubr.f32.mxu0 0.0
  %v1605 = vand.u32 %v1412, 4294901760
  %v1606 = vsub.f32 %v1412, %v1605
  %v1607 = vand.u32 %v1606, 4294901760
  %v1608 = vsub.f32 %v1606, %v1607
  %v1609 = vand.u32 %v1608, 4294901760
  %1610 = vmatmul.mubr.f32.gmra.mrb[0].mxu0 %v1609
  %v1611 = vpop.f32.mrb[0].mxu0
  %v1612 = vadd.f32 0.0, %v1611
  %v1613 = vpop.f32.mrb[0].mxu0
  %1614 = vmatprep.mubr.f32.mxu0 0.0
  %v1615 = vand.u32 %v1415, 4294901760
  %v1616 = vsub.f32 %v1415, %v1615
  %v1617 = vand.u32 %v1616, 4294901760
  %v1618 = vsub.f32 %v1616, %v1617
  %v1619 = vand.u32 %v1618, 4294901760
  %1620 = vmatmul.mubr.f32.gmra.mrb[0].mxu0 %v1619
  %v1621 = vpop.f32.mrb[0].mxu0
  %v1622 = vadd.f32 0.0, %v1621
  %v1623 = vpop.f32.mrb[0].mxu0
  %1624 = vmatprep.mubr.f32.mxu0 0.0
  %v1625 = vand.u32 %v1418, 4294901760
  %v1626 = vsub.f32 %v1418, %v1625
  %v1627 = vand.u32 %v1626, 4294901760
  %v1628 = vsub.f32 %v1626, %v1627
  %v1629 = vand.u32 %v1628, 4294901760
  %1630 = vmatmul.mubr.f32.gmra.mrb[0].mxu0 %v1629
  %v1631 = vpop.f32.mrb[0].mxu0
  %v1632 = vadd.f32 0.0, %v1631
  %v1633 = vpop.f32.mrb[0].mxu0
  %1634 = vmatprep.mubr.f32.mxu0 0.0
  %v1635 = vand.u32 %v1421, 4294901760
  %v1636 = vsub.f32 %v1421, %v1635
  %v1637 = vand.u32 %v1636, 4294901760
  %v1638 = vsub.f32 %v1636, %v1637
  %v1639 = vand.u32 %v1638, 4294901760
  %1640 = vmatmul.mubr.f32.gmra.mrb[0].mxu0 %v1639
  %v1641 = vpop.f32.mrb[0].mxu0
  %v1642 = vadd.f32 0.0, %v1641
  %v1643 = vpop.f32.mrb[0].mxu0
  %1644 = vmatprep.mubr.f32.mxu0 0.0
  %v1645 = vand.u32 %v1424, 4294901760
  %v1646 = vsub.f32 %v1424, %v1645
  %v1647 = vand.u32 %v1646, 4294901760
  %v1648 = vsub.f32 %v1646, %v1647
  %v1649 = vand.u32 %v1648, 4294901760
  %1650 = vmatmul.mubr.f32.gmra.mrb[0].mxu0 %v1649
  %v1651 = vpop.f32.mrb[0].mxu0
  %v1652 = vadd.f32 0.0, %v1651
  %v1653 = vpop.f32.mrb[0].mxu0
  %1654 = vdwg.mxu0
  %1655 = vmatprep.subr.mxu0 0.0
  %v1656 = vand.u32 %v1367, 4294901760
  %v1657 = vsub.f32 %v1367, %v1656
  %v1658 = vand.u32 %v1657, 4294901760
  %v1659 = vsub.f32 %v1657, %v1658
  %v1660 = vand.u32 %v1659, 4294901760
  %1661 = vmatpush1.msra.mxu0 %v1660
  %1662 = vmatprep.subr.mxu0 0.0
  %v1663 = vand.u32 %v1369, 4294901760
  %v1664 = vsub.f32 %v1369, %v1663
  %v1665 = vand.u32 %v1664, 4294901760
  %v1666 = vsub.f32 %v1664, %v1665
  %v1667 = vand.u32 %v1666, 4294901760
  %1668 = vmatpush1.msra.mxu0 %v1667
  %1669 = vmatprep.subr.mxu0 0.0
  %v1670 = vand.u32 %v1371, 4294901760
  %v1671 = vsub.f32 %v1371, %v1670
  %v1672 = vand.u32 %v1671, 4294901760
  %v1673 = vsub.f32 %v1671, %v1672
  %v1674 = vand.u32 %v1673, 4294901760
  %1675 = vmatpush1.msra.mxu0 %v1674
  %1676 = vmatprep.subr.mxu0 0.0
  %v1677 = vand.u32 %v1373, 4294901760
  %v1678 = vsub.f32 %v1373, %v1677
  %v1679 = vand.u32 %v1678, 4294901760
  %v1680 = vsub.f32 %v1678, %v1679
  %v1681 = vand.u32 %v1680, 4294901760
  %1682 = vmatpush1.msra.mxu0 %v1681
  %1683 = vmatprep.subr.mxu0 0.0
  %1684 = vmatpush1.msra.mxu0 0.0
  %1685 = vmatprep.subr.mxu0 0.0
  %1686 = vmatpush1.msra.mxu0 0.0
  %1687 = vmatprep.subr.mxu0 0.0
  %1688 = vmatpush1.msra.mxu0 0.0
  %1689 = vmatprep.subr.mxu0 0.0
  %1690 = vmatpush1.msra.mxu0 0.0
  %1691 = vmatprep.subr.mxu0 0.0
  %1692 = vmatpush1.msra.mxu0 0.0
  %1693 = vmatprep.subr.mxu0 0.0
  %1694 = vmatpush1.msra.mxu0 0.0
  %1695 = vmatprep.subr.mxu0 0.0
  %1696 = vmatpush1.msra.mxu0 0.0
  %1697 = vmatprep.subr.mxu0 0.0
  %1698 = vmatpush1.msra.mxu0 0.0
  %1699 = vmatprep.subr.mxu0 0.0
  %1700 = vmatpush1.msra.mxu0 0.0
  %1701 = vmatprep.subr.mxu0 0.0
  %1702 = vmatpush1.msra.mxu0 0.0
  %1703 = vmatprep.subr.mxu0 0.0
  %1704 = vmatpush1.msra.mxu0 0.0
  %1705 = vmatprep.subr.mxu0 0.0
  %1706 = vmatpush1.msra.mxu0 0.0
  %1707 = vmatprep.subr.mxu0 0.0
  %1708 = vmatpush1.msra.mxu0 0.0
  %1709 = vmatprep.subr.mxu0 0.0
  %1710 = vmatpush1.msra.mxu0 0.0
  %1711 = vmatprep.subr.mxu0 0.0
  %1712 = vmatpush1.msra.mxu0 0.0
  %1713 = vmatprep.subr.mxu0 0.0
  %1714 = vmatpush1.msra.mxu0 0.0
  %1715 = vmatprep.subr.mxu0 0.0
  %1716 = vmatpush1.msra.mxu0 0.0
  %1717 = vmatprep.subr.mxu0 0.0
  %1718 = vmatpush1.msra.mxu0 0.0
  %1719 = vmatprep.subr.mxu0 0.0
  %1720 = vmatpush1.msra.mxu0 0.0
  %1721 = vmatprep.subr.mxu0 0.0
  %1722 = vmatpush1.msra.mxu0 0.0
  %1723 = vmatprep.subr.mxu0 0.0
  %1724 = vmatpush1.msra.mxu0 0.0
  %1725 = vmatprep.subr.mxu0 0.0
  %1726 = vmatpush1.msra.mxu0 0.0
  %1727 = vmatprep.subr.mxu0 0.0
  %1728 = vmatpush1.msra.mxu0 0.0
  %1729 = vmatprep.subr.mxu0 0.0
  %1730 = vmatpush1.msra.mxu0 0.0
  %1731 = vmatprep.subr.mxu0 0.0
  %1732 = vmatpush1.msra.mxu0 0.0
  %1733 = vmatprep.subr.mxu0 0.0
  %1734 = vmatpush1.msra.mxu0 0.0
  %1735 = vmatprep.subr.mxu0 0.0
  %1736 = vmatpush1.msra.mxu0 0.0
  %1737 = vmatprep.subr.mxu0 0.0
  %1738 = vmatpush1.msra.mxu0 0.0
  %1739 = vmatprep.mubr.f32.mxu0 0.0
  %v1740 = vand.u32 %v1379, 4294901760
  %1741 = vmatmul.mubr.f32.gmra.mrb[0].mxu0 %v1740
  %v1742 = vpop.f32.mrb[0].mxu0
  %v1743 = vadd.f32 %v1502, %v1742
  %v1744 = vpop.f32.mrb[0].mxu0
  %1745 = vmatprep.mubr.f32.mxu0 0.0
  %v1746 = vand.u32 %v1382, 4294901760
  %1747 = vmatmul.mubr.f32.gmra.mrb[0].mxu0 %v1746
  %v1748 = vpop.f32.mrb[0].mxu0
  %v1749 = vadd.f32 %v1512, %v1748
  %v1750 = vpop.f32.mrb[0].mxu0
  %1751 = vmatprep.mubr.f32.mxu0 0.0
  %v1752 = vand.u32 %v1385, 4294901760
  %1753 = vmatmul.mubr.f32.gmra.mrb[0].mxu0 %v1752
  %v1754 = vpop.f32.mrb[0].mxu0
  %v1755 = vadd.f32 %v1522, %v1754
  %v1756 = vpop.f32.mrb[0].mxu0
  %1757 = vmatprep.mubr.f32.mxu0 0.0
  %v1758 = vand.u32 %v1388, 4294901760
  %1759 = vmatmul.mubr.f32.gmra.mrb[0].mxu0 %v1758
  %v1760 = vpop.f32.mrb[0].mxu0
  %v1761 = vadd.f32 %v1532, %v1760
  %v1762 = vpop.f32.mrb[0].mxu0
  %1763 = vmatprep.mubr.f32.mxu0 0.0
  %v1764 = vand.u32 %v1391, 4294901760
  %1765 = vmatmul.mubr.f32.gmra.mrb[0].mxu0 %v1764
  %v1766 = vpop.f32.mrb[0].mxu0
  %v1767 = vadd.f32 %v1542, %v1766
  %v1768 = vpop.f32.mrb[0].mxu0
  %1769 = vmatprep.mubr.f32.mxu0 0.0
  %v1770 = vand.u32 %v1394, 4294901760
  %1771 = vmatmul.mubr.f32.gmra.mrb[0].mxu0 %v1770
  %v1772 = vpop.f32.mrb[0].mxu0
  %v1773 = vadd.f32 %v1552, %v1772
  %v1774 = vpop.f32.mrb[0].mxu0
  %1775 = vmatprep.mubr.f32.mxu0 0.0
  %v1776 = vand.u32 %v1397, 4294901760
  %1777 = vmatmul.mubr.f32.gmra.mrb[0].mxu0 %v1776
  %v1778 = vpop.f32.mrb[0].mxu0
  %v1779 = vadd.f32 %v1562, %v1778
  %v1780 = vpop.f32.mrb[0].mxu0
  %1781 = vmatprep.mubr.f32.mxu0 0.0
  %v1782 = vand.u32 %v1400, 4294901760
  %1783 = vmatmul.mubr.f32.gmra.mrb[0].mxu0 %v1782
  %v1784 = vpop.f32.mrb[0].mxu0
  %v1785 = vadd.f32 %v1572, %v1784
  %v1786 = vpop.f32.mrb[0].mxu0
  %1787 = vmatprep.mubr.f32.mxu0 0.0
  %v1788 = vand.u32 %v1403, 4294901760
  %1789 = vmatmul.mubr.f32.gmra.mrb[0].mxu0 %v1788
  %v1790 = vpop.f32.mrb[0].mxu0
  %v1791 = vadd.f32 %v1582, %v1790
  %v1792 = vpop.f32.mrb[0].mxu0
  %1793 = vmatprep.mubr.f32.mxu0 0.0
  %v1794 = vand.u32 %v1406, 4294901760
  %1795 = vmatmul.mubr.f32.gmra.mrb[0].mxu0 %v1794
  %v1796 = vpop.f32.mrb[0].mxu0
  %v1797 = vadd.f32 %v1592, %v1796
  %v1798 = vpop.f32.mrb[0].mxu0
  %1799 = vmatprep.mubr.f32.mxu0 0.0
  %v1800 = vand.u32 %v1409, 4294901760
  %1801 = vmatmul.mubr.f32.gmra.mrb[0].mxu0 %v1800
  %v1802 = vpop.f32.mrb[0].mxu0
  %v1803 = vadd.f32 %v1602, %v1802
  %v1804 = vpop.f32.mrb[0].mxu0
  %1805 = vmatprep.mubr.f32.mxu0 0.0
  %v1806 = vand.u32 %v1412, 4294901760
  %1807 = vmatmul.mubr.f32.gmra.mrb[0].mxu0 %v1806
  %v1808 = vpop.f32.mrb[0].mxu0
  %v1809 = vadd.f32 %v1612, %v1808
  %v1810 = vpop.f32.mrb[0].mxu0
  %1811 = vmatprep.mubr.f32.mxu0 0.0
  %v1812 = vand.u32 %v1415, 4294901760
  %1813 = vmatmul.mubr.f32.gmra.mrb[0].mxu0 %v1812
  %v1814 = vpop.f32.mrb[0].mxu0
  %v1815 = vadd.f32 %v1622, %v1814
  %v1816 = vpop.f32.mrb[0].mxu0
  %1817 = vmatprep.mubr.f32.mxu0 0.0
  %v1818 = vand.u32 %v1418, 4294901760
  %1819 = vmatmul.mubr.f32.gmra.mrb[0].mxu0 %v1818
  %v1820 = vpop.f32.mrb[0].mxu0
  %v1821 = vadd.f32 %v1632, %v1820
  %v1822 = vpop.f32.mrb[0].mxu0
  %1823 = vmatprep.mubr.f32.mxu0 0.0
  %v1824 = vand.u32 %v1421, 4294901760
  %1825 = vmatmul.mubr.f32.gmra.mrb[0].mxu0 %v1824
  %v1826 = vpop.f32.mrb[0].mxu0
  %v1827 = vadd.f32 %v1642, %v1826
  %v1828 = vpop.f32.mrb[0].mxu0
  %1829 = vmatprep.mubr.f32.mxu0 0.0
  %v1830 = vand.u32 %v1424, 4294901760
  %1831 = vmatmul.mubr.f32.gmra.mrb[0].mxu0 %v1830
  %v1832 = vpop.f32.mrb[0].mxu0
  %v1833 = vadd.f32 %v1652, %v1832
  %v1834 = vpop.f32.mrb[0].mxu0
  %1835 = vdwg.mxu0
  %1836 = vmatprep.subr.mxu0 0.0
  %v1837 = vand.u32 %v1367, 4294901760
  %v1838 = vsub.f32 %v1367, %v1837
  %1839 = vmatpush1.msra.mxu0 %v1838
  %1840 = vmatprep.subr.mxu0 0.0
  %v1841 = vand.u32 %v1369, 4294901760
  %v1842 = vsub.f32 %v1369, %v1841
  %1843 = vmatpush1.msra.mxu0 %v1842
  %1844 = vmatprep.subr.mxu0 0.0
  %v1845 = vand.u32 %v1371, 4294901760
  %v1846 = vsub.f32 %v1371, %v1845
  %1847 = vmatpush1.msra.mxu0 %v1846
  %1848 = vmatprep.subr.mxu0 0.0
  %v1849 = vand.u32 %v1373, 4294901760
  %v1850 = vsub.f32 %v1373, %v1849
  %1851 = vmatpush1.msra.mxu0 %v1850
  %1852 = vmatprep.subr.mxu0 0.0
  %1853 = vmatpush1.msra.mxu0 0.0
  %1854 = vmatprep.subr.mxu0 0.0
  %1855 = vmatpush1.msra.mxu0 0.0
  %1856 = vmatprep.subr.mxu0 0.0
  %1857 = vmatpush1.msra.mxu0 0.0
  %1858 = vmatprep.subr.mxu0 0.0
  %1859 = vmatpush1.msra.mxu0 0.0
  %1860 = vmatprep.subr.mxu0 0.0
  %1861 = vmatpush1.msra.mxu0 0.0
  %1862 = vmatprep.subr.mxu0 0.0
  %1863 = vmatpush1.msra.mxu0 0.0
  %1864 = vmatprep.subr.mxu0 0.0
  %1865 = vmatpush1.msra.mxu0 0.0
  %1866 = vmatprep.subr.mxu0 0.0
  %1867 = vmatpush1.msra.mxu0 0.0
  %1868 = vmatprep.subr.mxu0 0.0
  %1869 = vmatpush1.msra.mxu0 0.0
  %1870 = vmatprep.subr.mxu0 0.0
  %1871 = vmatpush1.msra.mxu0 0.0
  %1872 = vmatprep.subr.mxu0 0.0
  %1873 = vmatpush1.msra.mxu0 0.0
  %1874 = vmatprep.subr.mxu0 0.0
  %1875 = vmatpush1.msra.mxu0 0.0
  %1876 = vmatprep.subr.mxu0 0.0
  %1877 = vmatpush1.msra.mxu0 0.0
  %1878 = vmatprep.subr.mxu0 0.0
  %1879 = vmatpush1.msra.mxu0 0.0
  %1880 = vmatprep.subr.mxu0 0.0
  %1881 = vmatpush1.msra.mxu0 0.0
  %1882 = vmatprep.subr.mxu0 0.0
  %1883 = vmatpush1.msra.mxu0 0.0
  %1884 = vmatprep.subr.mxu0 0.0
  %1885 = vmatpush1.msra.mxu0 0.0
  %1886 = vmatprep.subr.mxu0 0.0
  %1887 = vmatpush1.msra.mxu0 0.0
  %1888 = vmatprep.subr.mxu0 0.0
  %1889 = vmatpush1.msra.mxu0 0.0
  %1890 = vmatprep.subr.mxu0 0.0
  %1891 = vmatpush1.msra.mxu0 0.0
  %1892 = vmatprep.subr.mxu0 0.0
  %1893 = vmatpush1.msra.mxu0 0.0
  %1894 = vmatprep.subr.mxu0 0.0
  %1895 = vmatpush1.msra.mxu0 0.0
  %1896 = vmatprep.subr.mxu0 0.0
  %1897 = vmatpush1.msra.mxu0 0.0
  %1898 = vmatprep.subr.mxu0 0.0
  %1899 = vmatpush1.msra.mxu0 0.0
  %1900 = vmatprep.subr.mxu0 0.0
  %1901 = vmatpush1.msra.mxu0 0.0
  %1902 = vmatprep.subr.mxu0 0.0
  %1903 = vmatpush1.msra.mxu0 0.0
  %1904 = vmatprep.subr.mxu0 0.0
  %1905 = vmatpush1.msra.mxu0 0.0
  %1906 = vmatprep.subr.mxu0 0.0
  %1907 = vmatpush1.msra.mxu0 0.0
  %1908 = vmatprep.mubr.f32.mxu0 0.0
  %v1909 = vand.u32 %v1379, 4294901760
  %v1910 = vsub.f32 %v1379, %v1909
  %1911 = vmatmul.mubr.f32.gmra.mrb[0].mxu0 %v1910
  %v1912 = vpop.f32.mrb[0].mxu0
  %v1913 = vadd.f32 %v1743, %v1912
  %v1914 = vpop.f32.mrb[0].mxu0
  %1915 = vmatprep.mubr.f32.mxu0 0.0
  %v1916 = vand.u32 %v1382, 4294901760
  %v1917 = vsub.f32 %v1382, %v1916
  %1918 = vmatmul.mubr.f32.gmra.mrb[0].mxu0 %v1917
  %v1919 = vpop.f32.mrb[0].mxu0
  %v1920 = vadd.f32 %v1749, %v1919
  %v1921 = vpop.f32.mrb[0].mxu0
  %1922 = vmatprep.mubr.f32.mxu0 0.0
  %v1923 = vand.u32 %v1385, 4294901760
  %v1924 = vsub.f32 %v1385, %v1923
  %1925 = vmatmul.mubr.f32.gmra.mrb[0].mxu0 %v1924
  %v1926 = vpop.f32.mrb[0].mxu0
  %v1927 = vadd.f32 %v1755, %v1926
  %v1928 = vpop.f32.mrb[0].mxu0
  %1929 = vmatprep.mubr.f32.mxu0 0.0
  %v1930 = vand.u32 %v1388, 4294901760
  %v1931 = vsub.f32 %v1388, %v1930
  %1932 = vmatmul.mubr.f32.gmra.mrb[0].mxu0 %v1931
  %v1933 = vpop.f32.mrb[0].mxu0
  %v1934 = vadd.f32 %v1761, %v1933
  %v1935 = vpop.f32.mrb[0].mxu0
  %1936 = vmatprep.mubr.f32.mxu0 0.0
  %v1937 = vand.u32 %v1391, 4294901760
  %v1938 = vsub.f32 %v1391, %v1937
  %1939 = vmatmul.mubr.f32.gmra.mrb[0].mxu0 %v1938
  %v1940 = vpop.f32.mrb[0].mxu0
  %v1941 = vadd.f32 %v1767, %v1940
  %v1942 = vpop.f32.mrb[0].mxu0
  %1943 = vmatprep.mubr.f32.mxu0 0.0
  %v1944 = vand.u32 %v1394, 4294901760
  %v1945 = vsub.f32 %v1394, %v1944
  %1946 = vmatmul.mubr.f32.gmra.mrb[0].mxu0 %v1945
  %v1947 = vpop.f32.mrb[0].mxu0
  %v1948 = vadd.f32 %v1773, %v1947
  %v1949 = vpop.f32.mrb[0].mxu0
  %1950 = vmatprep.mubr.f32.mxu0 0.0
  %v1951 = vand.u32 %v1397, 4294901760
  %v1952 = vsub.f32 %v1397, %v1951
  %1953 = vmatmul.mubr.f32.gmra.mrb[0].mxu0 %v1952
  %v1954 = vpop.f32.mrb[0].mxu0
  %v1955 = vadd.f32 %v1779, %v1954
  %v1956 = vpop.f32.mrb[0].mxu0
  %1957 = vmatprep.mubr.f32.mxu0 0.0
  %v1958 = vand.u32 %v1400, 4294901760
  %v1959 = vsub.f32 %v1400, %v1958
  %1960 = vmatmul.mubr.f32.gmra.mrb[0].mxu0 %v1959
  %v1961 = vpop.f32.mrb[0].mxu0
  %v1962 = vadd.f32 %v1785, %v1961
  %v1963 = vpop.f32.mrb[0].mxu0
  %1964 = vmatprep.mubr.f32.mxu0 0.0
  %v1965 = vand.u32 %v1403, 4294901760
  %v1966 = vsub.f32 %v1403, %v1965
  %1967 = vmatmul.mubr.f32.gmra.mrb[0].mxu0 %v1966
  %v1968 = vpop.f32.mrb[0].mxu0
  %v1969 = vadd.f32 %v1791, %v1968
  %v1970 = vpop.f32.mrb[0].mxu0
  %1971 = vmatprep.mubr.f32.mxu0 0.0
  %v1972 = vand.u32 %v1406, 4294901760
  %v1973 = vsub.f32 %v1406, %v1972
  %1974 = vmatmul.mubr.f32.gmra.mrb[0].mxu0 %v1973
  %v1975 = vpop.f32.mrb[0].mxu0
  %v1976 = vadd.f32 %v1797, %v1975
  %v1977 = vpop.f32.mrb[0].mxu0
  %1978 = vmatprep.mubr.f32.mxu0 0.0
  %v1979 = vand.u32 %v1409, 4294901760
  %v1980 = vsub.f32 %v1409, %v1979
  %1981 = vmatmul.mubr.f32.gmra.mrb[0].mxu0 %v1980
  %v1982 = vpop.f32.mrb[0].mxu0
  %v1983 = vadd.f32 %v1803, %v1982
  %v1984 = vpop.f32.mrb[0].mxu0
  %1985 = vmatprep.mubr.f32.mxu0 0.0
  %v1986 = vand.u32 %v1412, 4294901760
  %v1987 = vsub.f32 %v1412, %v1986
  %1988 = vmatmul.mubr.f32.gmra.mrb[0].mxu0 %v1987
  %v1989 = vpop.f32.mrb[0].mxu0
  %v1990 = vadd.f32 %v1809, %v1989
  %v1991 = vpop.f32.mrb[0].mxu0
  %1992 = vmatprep.mubr.f32.mxu0 0.0
  %v1993 = vand.u32 %v1415, 4294901760
  %v1994 = vsub.f32 %v1415, %v1993
  %1995 = vmatmul.mubr.f32.gmra.mrb[0].mxu0 %v1994
  %v1996 = vpop.f32.mrb[0].mxu0
  %v1997 = vadd.f32 %v1815, %v1996
  %v1998 = vpop.f32.mrb[0].mxu0
  %1999 = vmatprep.mubr.f32.mxu0 0.0
  %v2000 = vand.u32 %v1418, 4294901760
  %v2001 = vsub.f32 %v1418, %v2000
  %2002 = vmatmul.mubr.f32.gmra.mrb[0].mxu0 %v2001
  %v2003 = vpop.f32.mrb[0].mxu0
  %v2004 = vadd.f32 %v1821, %v2003
  %v2005 = vpop.f32.mrb[0].mxu0
  %2006 = vmatprep.mubr.f32.mxu0 0.0
  %v2007 = vand.u32 %v1421, 4294901760
  %v2008 = vsub.f32 %v1421, %v2007
  %2009 = vmatmul.mubr.f32.gmra.mrb[0].mxu0 %v2008
  %v2010 = vpop.f32.mrb[0].mxu0
  %v2011 = vadd.f32 %v1827, %v2010
  %v2012 = vpop.f32.mrb[0].mxu0
  %2013 = vmatprep.mubr.f32.mxu0 0.0
  %v2014 = vand.u32 %v1424, 4294901760
  %v2015 = vsub.f32 %v1424, %v2014
  %2016 = vmatmul.mubr.f32.gmra.mrb[0].mxu0 %v2015
  %v2017 = vpop.f32.mrb[0].mxu0
  %v2018 = vadd.f32 %v1833, %v2017
  %v2019 = vpop.f32.mrb[0].mxu0
  %2020 = vdwg.mxu0
  %2021 = vmatprep.subr.mxu0 0.0
  %v2022 = vand.u32 %v1367, 4294901760
  %2023 = vmatpush1.msra.mxu0 %v2022
  %2024 = vmatprep.subr.mxu0 0.0
  %v2025 = vand.u32 %v1369, 4294901760
  %2026 = vmatpush1.msra.mxu0 %v2025
  %2027 = vmatprep.subr.mxu0 0.0
  %v2028 = vand.u32 %v1371, 4294901760
  %2029 = vmatpush1.msra.mxu0 %v2028
  %2030 = vmatprep.subr.mxu0 0.0
  %v2031 = vand.u32 %v1373, 4294901760
  %2032 = vmatpush1.msra.mxu0 %v2031
  %2033 = vmatprep.subr.mxu0 0.0
  %2034 = vmatpush1.msra.mxu0 0.0
  %2035 = vmatprep.subr.mxu0 0.0
  %2036 = vmatpush1.msra.mxu0 0.0
  %2037 = vmatprep.subr.mxu0 0.0
  %2038 = vmatpush1.msra.mxu0 0.0
  %2039 = vmatprep.subr.mxu0 0.0
  %2040 = vmatpush1.msra.mxu0 0.0
  %2041 = vmatprep.subr.mxu0 0.0
  %2042 = vmatpush1.msra.mxu0 0.0
  %2043 = vmatprep.subr.mxu0 0.0
  %2044 = vmatpush1.msra.mxu0 0.0
  %2045 = vmatprep.subr.mxu0 0.0
  %2046 = vmatpush1.msra.mxu0 0.0
  %2047 = vmatprep.subr.mxu0 0.0
  %2048 = vmatpush1.msra.mxu0 0.0
  %2049 = vmatprep.subr.mxu0 0.0
  %2050 = vmatpush1.msra.mxu0 0.0
  %2051 = vmatprep.subr.mxu0 0.0
  %2052 = vmatpush1.msra.mxu0 0.0
  %2053 = vmatprep.subr.mxu0 0.0
  %2054 = vmatpush1.msra.mxu0 0.0
  %2055 = vmatprep.subr.mxu0 0.0
  %2056 = vmatpush1.msra.mxu0 0.0
  %2057 = vmatprep.subr.mxu0 0.0
  %2058 = vmatpush1.msra.mxu0 0.0
  %2059 = vmatprep.subr.mxu0 0.0
  %2060 = vmatpush1.msra.mxu0 0.0
  %2061 = vmatprep.subr.mxu0 0.0
  %2062 = vmatpush1.msra.mxu0 0.0
  %2063 = vmatprep.subr.mxu0 0.0
  %2064 = vmatpush1.msra.mxu0 0.0
  %2065 = vmatprep.subr.mxu0 0.0
  %2066 = vmatpush1.msra.mxu0 0.0
  %2067 = vmatprep.subr.mxu0 0.0
  %2068 = vmatpush1.msra.mxu0 0.0
  %2069 = vmatprep.subr.mxu0 0.0
  %2070 = vmatpush1.msra.mxu0 0.0
  %2071 = vmatprep.subr.mxu0 0.0
  %2072 = vmatpush1.msra.mxu0 0.0
  %2073 = vmatprep.subr.mxu0 0.0
  %2074 = vmatpush1.msra.mxu0 0.0
  %2075 = vmatprep.subr.mxu0 0.0
  %2076 = vmatpush1.msra.mxu0 0.0
  %2077 = vmatprep.subr.mxu0 0.0
  %2078 = vmatpush1.msra.mxu0 0.0
  %2079 = vmatprep.subr.mxu0 0.0
  %2080 = vmatpush1.msra.mxu0 0.0
  %2081 = vmatprep.subr.mxu0 0.0
  %2082 = vmatpush1.msra.mxu0 0.0
  %2083 = vmatprep.subr.mxu0 0.0
  %2084 = vmatpush1.msra.mxu0 0.0
  %2085 = vmatprep.subr.mxu0 0.0
  %2086 = vmatpush1.msra.mxu0 0.0
  %2087 = vmatprep.subr.mxu0 0.0
  %2088 = vmatpush1.msra.mxu0 0.0
  %2089 = vmatprep.mubr.f32.mxu0 0.0
  %v2090 = vand.u32 %v1379, 4294901760
  %v2091 = vsub.f32 %v1379, %v2090
  %v2092 = vand.u32 %v2091, 4294901760
  %2093 = vmatmul.mubr.f32.gmra.mrb[0].mxu0 %v2092
  %v2094 = vpop.f32.mrb[0].mxu0
  %v2095 = vadd.f32 %v1913, %v2094
  %v2096 = vpop.f32.mrb[0].mxu0
  %2097 = vmatprep.mubr.f32.mxu0 0.0
  %v2098 = vand.u32 %v1382, 4294901760
  %v2099 = vsub.f32 %v1382, %v2098
  %v2100 = vand.u32 %v2099, 4294901760
  %2101 = vmatmul.mubr.f32.gmra.mrb[0].mxu0 %v2100
  %v2102 = vpop.f32.mrb[0].mxu0
  %v2103 = vadd.f32 %v1920, %v2102
  %v2104 = vpop.f32.mrb[0].mxu0
  %2105 = vmatprep.mubr.f32.mxu0 0.0
  %v2106 = vand.u32 %v1385, 4294901760
  %v2107 = vsub.f32 %v1385, %v2106
  %v2108 = vand.u32 %v2107, 4294901760
  %2109 = vmatmul.mubr.f32.gmra.mrb[0].mxu0 %v2108
  %v2110 = vpop.f32.mrb[0].mxu0
  %v2111 = vadd.f32 %v1927, %v2110
  %v2112 = vpop.f32.mrb[0].mxu0
  %2113 = vmatprep.mubr.f32.mxu0 0.0
  %v2114 = vand.u32 %v1388, 4294901760
  %v2115 = vsub.f32 %v1388, %v2114
  %v2116 = vand.u32 %v2115, 4294901760
  %2117 = vmatmul.mubr.f32.gmra.mrb[0].mxu0 %v2116
  %v2118 = vpop.f32.mrb[0].mxu0
  %v2119 = vadd.f32 %v1934, %v2118
  %v2120 = vpop.f32.mrb[0].mxu0
  %2121 = vmatprep.mubr.f32.mxu0 0.0
  %v2122 = vand.u32 %v1391, 4294901760
  %v2123 = vsub.f32 %v1391, %v2122
  %v2124 = vand.u32 %v2123, 4294901760
  %2125 = vmatmul.mubr.f32.gmra.mrb[0].mxu0 %v2124
  %v2126 = vpop.f32.mrb[0].mxu0
  %v2127 = vadd.f32 %v1941, %v2126
  %v2128 = vpop.f32.mrb[0].mxu0
  %2129 = vmatprep.mubr.f32.mxu0 0.0
  %v2130 = vand.u32 %v1394, 4294901760
  %v2131 = vsub.f32 %v1394, %v2130
  %v2132 = vand.u32 %v2131, 4294901760
  %2133 = vmatmul.mubr.f32.gmra.mrb[0].mxu0 %v2132
  %v2134 = vpop.f32.mrb[0].mxu0
  %v2135 = vadd.f32 %v1948, %v2134
  %v2136 = vpop.f32.mrb[0].mxu0
  %2137 = vmatprep.mubr.f32.mxu0 0.0
  %v2138 = vand.u32 %v1397, 4294901760
  %v2139 = vsub.f32 %v1397, %v2138
  %v2140 = vand.u32 %v2139, 4294901760
  %2141 = vmatmul.mubr.f32.gmra.mrb[0].mxu0 %v2140
  %v2142 = vpop.f32.mrb[0].mxu0
  %v2143 = vadd.f32 %v1955, %v2142
  %v2144 = vpop.f32.mrb[0].mxu0
  %2145 = vmatprep.mubr.f32.mxu0 0.0
  %v2146 = vand.u32 %v1400, 4294901760
  %v2147 = vsub.f32 %v1400, %v2146
  %v2148 = vand.u32 %v2147, 4294901760
  %2149 = vmatmul.mubr.f32.gmra.mrb[0].mxu0 %v2148
  %v2150 = vpop.f32.mrb[0].mxu0
  %v2151 = vadd.f32 %v1962, %v2150
  %v2152 = vpop.f32.mrb[0].mxu0
  %2153 = vmatprep.mubr.f32.mxu0 0.0
  %v2154 = vand.u32 %v1403, 4294901760
  %v2155 = vsub.f32 %v1403, %v2154
  %v2156 = vand.u32 %v2155, 4294901760
  %2157 = vmatmul.mubr.f32.gmra.mrb[0].mxu0 %v2156
  %v2158 = vpop.f32.mrb[0].mxu0
  %v2159 = vadd.f32 %v1969, %v2158
  %v2160 = vpop.f32.mrb[0].mxu0
  %2161 = vmatprep.mubr.f32.mxu0 0.0
  %v2162 = vand.u32 %v1406, 4294901760
  %v2163 = vsub.f32 %v1406, %v2162
  %v2164 = vand.u32 %v2163, 4294901760
  %2165 = vmatmul.mubr.f32.gmra.mrb[0].mxu0 %v2164
  %v2166 = vpop.f32.mrb[0].mxu0
  %v2167 = vadd.f32 %v1976, %v2166
  %v2168 = vpop.f32.mrb[0].mxu0
  %2169 = vmatprep.mubr.f32.mxu0 0.0
  %v2170 = vand.u32 %v1409, 4294901760
  %v2171 = vsub.f32 %v1409, %v2170
  %v2172 = vand.u32 %v2171, 4294901760
  %2173 = vmatmul.mubr.f32.gmra.mrb[0].mxu0 %v2172
  %v2174 = vpop.f32.mrb[0].mxu0
  %v2175 = vadd.f32 %v1983, %v2174
  %v2176 = vpop.f32.mrb[0].mxu0
  %2177 = vmatprep.mubr.f32.mxu0 0.0
  %v2178 = vand.u32 %v1412, 4294901760
  %v2179 = vsub.f32 %v1412, %v2178
  %v2180 = vand.u32 %v2179, 4294901760
  %2181 = vmatmul.mubr.f32.gmra.mrb[0].mxu0 %v2180
  %v2182 = vpop.f32.mrb[0].mxu0
  %v2183 = vadd.f32 %v1990, %v2182
  %v2184 = vpop.f32.mrb[0].mxu0
  %2185 = vmatprep.mubr.f32.mxu0 0.0
  %v2186 = vand.u32 %v1415, 4294901760
  %v2187 = vsub.f32 %v1415, %v2186
  %v2188 = vand.u32 %v2187, 4294901760
  %2189 = vmatmul.mubr.f32.gmra.mrb[0].mxu0 %v2188
  %v2190 = vpop.f32.mrb[0].mxu0
  %v2191 = vadd.f32 %v1997, %v2190
  %v2192 = vpop.f32.mrb[0].mxu0
  %2193 = vmatprep.mubr.f32.mxu0 0.0
  %v2194 = vand.u32 %v1418, 4294901760
  %v2195 = vsub.f32 %v1418, %v2194
  %v2196 = vand.u32 %v2195, 4294901760
  %2197 = vmatmul.mubr.f32.gmra.mrb[0].mxu0 %v2196
  %v2198 = vpop.f32.mrb[0].mxu0
  %v2199 = vadd.f32 %v2004, %v2198
  %v2200 = vpop.f32.mrb[0].mxu0
  %2201 = vmatprep.mubr.f32.mxu0 0.0
  %v2202 = vand.u32 %v1421, 4294901760
  %v2203 = vsub.f32 %v1421, %v2202
  %v2204 = vand.u32 %v2203, 4294901760
  %2205 = vmatmul.mubr.f32.gmra.mrb[0].mxu0 %v2204
  %v2206 = vpop.f32.mrb[0].mxu0
  %v2207 = vadd.f32 %v2011, %v2206
  %v2208 = vpop.f32.mrb[0].mxu0
  %2209 = vmatprep.mubr.f32.mxu0 0.0
  %v2210 = vand.u32 %v1424, 4294901760
  %v2211 = vsub.f32 %v1424, %v2210
  %v2212 = vand.u32 %v2211, 4294901760
  %2213 = vmatmul.mubr.f32.gmra.mrb[0].mxu0 %v2212
  %v2214 = vpop.f32.mrb[0].mxu0
  %v2215 = vadd.f32 %v2018, %v2214
  %v2216 = vpop.f32.mrb[0].mxu0
  %2217 = vdwg.mxu0
  %2218 = vmatprep.subr.mxu0 0.0
  %v2219 = vand.u32 %v1367, 4294901760
  %v2220 = vsub.f32 %v1367, %v2219
  %v2221 = vand.u32 %v2220, 4294901760
  %2222 = vmatpush1.msra.mxu0 %v2221
  %2223 = vmatprep.subr.mxu0 0.0
  %v2224 = vand.u32 %v1369, 4294901760
  %v2225 = vsub.f32 %v1369, %v2224
  %v2226 = vand.u32 %v2225, 4294901760
  %2227 = vmatpush1.msra.mxu0 %v2226
  %2228 = vmatprep.subr.mxu0 0.0
  %v2229 = vand.u32 %v1371, 4294901760
  %v2230 = vsub.f32 %v1371, %v2229
  %v2231 = vand.u32 %v2230, 4294901760
  %2232 = vmatpush1.msra.mxu0 %v2231
  %2233 = vmatprep.subr.mxu0 0.0
  %v2234 = vand.u32 %v1373, 4294901760
  %v2235 = vsub.f32 %v1373, %v2234
  %v2236 = vand.u32 %v2235, 4294901760
  %2237 = vmatpush1.msra.mxu0 %v2236
  %2238 = vmatprep.subr.mxu0 0.0
  %2239 = vmatpush1.msra.mxu0 0.0
  %2240 = vmatprep.subr.mxu0 0.0
  %2241 = vmatpush1.msra.mxu0 0.0
  %2242 = vmatprep.subr.mxu0 0.0
  %2243 = vmatpush1.msra.mxu0 0.0
  %2244 = vmatprep.subr.mxu0 0.0
  %2245 = vmatpush1.msra.mxu0 0.0
  %2246 = vmatprep.subr.mxu0 0.0
  %2247 = vmatpush1.msra.mxu0 0.0
  %2248 = vmatprep.subr.mxu0 0.0
  %2249 = vmatpush1.msra.mxu0 0.0
  %2250 = vmatprep.subr.mxu0 0.0
  %2251 = vmatpush1.msra.mxu0 0.0
  %2252 = vmatprep.subr.mxu0 0.0
  %2253 = vmatpush1.msra.mxu0 0.0
  %2254 = vmatprep.subr.mxu0 0.0
  %2255 = vmatpush1.msra.mxu0 0.0
  %2256 = vmatprep.subr.mxu0 0.0
  %2257 = vmatpush1.msra.mxu0 0.0
  %2258 = vmatprep.subr.mxu0 0.0
  %2259 = vmatpush1.msra.mxu0 0.0
  %2260 = vmatprep.subr.mxu0 0.0
  %2261 = vmatpush1.msra.mxu0 0.0
  %2262 = vmatprep.subr.mxu0 0.0
  %2263 = vmatpush1.msra.mxu0 0.0
  %2264 = vmatprep.subr.mxu0 0.0
  %2265 = vmatpush1.msra.mxu0 0.0
  %2266 = vmatprep.subr.mxu0 0.0
  %2267 = vmatpush1.msra.mxu0 0.0
  %2268 = vmatprep.subr.mxu0 0.0
  %2269 = vmatpush1.msra.mxu0 0.0
  %2270 = vmatprep.subr.mxu0 0.0
  %2271 = vmatpush1.msra.mxu0 0.0
  %2272 = vmatprep.subr.mxu0 0.0
  %2273 = vmatpush1.msra.mxu0 0.0
  %2274 = vmatprep.subr.mxu0 0.0
  %2275 = vmatpush1.msra.mxu0 0.0
  %2276 = vmatprep.subr.mxu0 0.0
  %2277 = vmatpush1.msra.mxu0 0.0
  %2278 = vmatprep.subr.mxu0 0.0
  %2279 = vmatpush1.msra.mxu0 0.0
  %2280 = vmatprep.subr.mxu0 0.0
  %2281 = vmatpush1.msra.mxu0 0.0
  %2282 = vmatprep.subr.mxu0 0.0
  %2283 = vmatpush1.msra.mxu0 0.0
  %2284 = vmatprep.subr.mxu0 0.0
  %2285 = vmatpush1.msra.mxu0 0.0
  %2286 = vmatprep.subr.mxu0 0.0
  %2287 = vmatpush1.msra.mxu0 0.0
  %2288 = vmatprep.subr.mxu0 0.0
  %2289 = vmatpush1.msra.mxu0 0.0
  %2290 = vmatprep.subr.mxu0 0.0
  %2291 = vmatpush1.msra.mxu0 0.0
  %2292 = vmatprep.subr.mxu0 0.0
  %2293 = vmatpush1.msra.mxu0 0.0
  %2294 = vmatprep.mubr.f32.mxu0 0.0
  %v2295 = vand.u32 %v1379, 4294901760
  %2296 = vmatmul.mubr.f32.gmra.mrb[0].mxu0 %v2295
  %v2297 = vpop.f32.mrb[0].mxu0
  %v2298 = vadd.f32 %v2095, %v2297
  %v2299 = vpop.f32.mrb[0].mxu0
  %2300 = vmatprep.mubr.f32.mxu0 0.0
  %v2301 = vand.u32 %v1382, 4294901760
  %2302 = vmatmul.mubr.f32.gmra.mrb[0].mxu0 %v2301
  %v2303 = vpop.f32.mrb[0].mxu0
  %v2304 = vadd.f32 %v2103, %v2303
  %v2305 = vpop.f32.mrb[0].mxu0
  %2306 = vmatprep.mubr.f32.mxu0 0.0
  %v2307 = vand.u32 %v1385, 4294901760
  %2308 = vmatmul.mubr.f32.gmra.mrb[0].mxu0 %v2307
  %v2309 = vpop.f32.mrb[0].mxu0
  %v2310 = vadd.f32 %v2111, %v2309
  %v2311 = vpop.f32.mrb[0].mxu0
  %2312 = vmatprep.mubr.f32.mxu0 0.0
  %v2313 = vand.u32 %v1388, 4294901760
  %2314 = vmatmul.mubr.f32.gmra.mrb[0].mxu0 %v2313
  %v2315 = vpop.f32.mrb[0].mxu0
  %v2316 = vadd.f32 %v2119, %v2315
  %v2317 = vpop.f32.mrb[0].mxu0
  %2318 = vmatprep.mubr.f32.mxu0 0.0
  %v2319 = vand.u32 %v1391, 4294901760
  %2320 = vmatmul.mubr.f32.gmra.mrb[0].mxu0 %v2319
  %v2321 = vpop.f32.mrb[0].mxu0
  %v2322 = vadd.f32 %v2127, %v2321
  %v2323 = vpop.f32.mrb[0].mxu0
  %2324 = vmatprep.mubr.f32.mxu0 0.0
  %v2325 = vand.u32 %v1394, 4294901760
  %2326 = vmatmul.mubr.f32.gmra.mrb[0].mxu0 %v2325
  %v2327 = vpop.f32.mrb[0].mxu0
  %v2328 = vadd.f32 %v2135, %v2327
  %v2329 = vpop.f32.mrb[0].mxu0
  %2330 = vmatprep.mubr.f32.mxu0 0.0
  %v2331 = vand.u32 %v1397, 4294901760
  %2332 = vmatmul.mubr.f32.gmra.mrb[0].mxu0 %v2331
  %v2333 = vpop.f32.mrb[0].mxu0
  %v2334 = vadd.f32 %v2143, %v2333
  %v2335 = vpop.f32.mrb[0].mxu0
  %2336 = vmatprep.mubr.f32.mxu0 0.0
  %v2337 = vand.u32 %v1400, 4294901760
  %2338 = vmatmul.mubr.f32.gmra.mrb[0].mxu0 %v2337
  %v2339 = vpop.f32.mrb[0].mxu0
  %v2340 = vadd.f32 %v2151, %v2339
  %v2341 = vpop.f32.mrb[0].mxu0
  %2342 = vmatprep.mubr.f32.mxu0 0.0
  %v2343 = vand.u32 %v1403, 4294901760
  %2344 = vmatmul.mubr.f32.gmra.mrb[0].mxu0 %v2343
  %v2345 = vpop.f32.mrb[0].mxu0
  %v2346 = vadd.f32 %v2159, %v2345
  %v2347 = vpop.f32.mrb[0].mxu0
  %2348 = vmatprep.mubr.f32.mxu0 0.0
  %v2349 = vand.u32 %v1406, 4294901760
  %2350 = vmatmul.mubr.f32.gmra.mrb[0].mxu0 %v2349
  %v2351 = vpop.f32.mrb[0].mxu0
  %v2352 = vadd.f32 %v2167, %v2351
  %v2353 = vpop.f32.mrb[0].mxu0
  %2354 = vmatprep.mubr.f32.mxu0 0.0
  %v2355 = vand.u32 %v1409, 4294901760
  %2356 = vmatmul.mubr.f32.gmra.mrb[0].mxu0 %v2355
  %v2357 = vpop.f32.mrb[0].mxu0
  %v2358 = vadd.f32 %v2175, %v2357
  %v2359 = vpop.f32.mrb[0].mxu0
  %2360 = vmatprep.mubr.f32.mxu0 0.0
  %v2361 = vand.u32 %v1412, 4294901760
  %2362 = vmatmul.mubr.f32.gmra.mrb[0].mxu0 %v2361
  %v2363 = vpop.f32.mrb[0].mxu0
  %v2364 = vadd.f32 %v2183, %v2363
  %v2365 = vpop.f32.mrb[0].mxu0
  %2366 = vmatprep.mubr.f32.mxu0 0.0
  %v2367 = vand.u32 %v1415, 4294901760
  %2368 = vmatmul.mubr.f32.gmra.mrb[0].mxu0 %v2367
  %v2369 = vpop.f32.mrb[0].mxu0
  %v2370 = vadd.f32 %v2191, %v2369
  %v2371 = vpop.f32.mrb[0].mxu0
  %2372 = vmatprep.mubr.f32.mxu0 0.0
  %v2373 = vand.u32 %v1418, 4294901760
  %2374 = vmatmul.mubr.f32.gmra.mrb[0].mxu0 %v2373
  %v2375 = vpop.f32.mrb[0].mxu0
  %v2376 = vadd.f32 %v2199, %v2375
  %v2377 = vpop.f32.mrb[0].mxu0
  %2378 = vmatprep.mubr.f32.mxu0 0.0
  %v2379 = vand.u32 %v1421, 4294901760
  %2380 = vmatmul.mubr.f32.gmra.mrb[0].mxu0 %v2379
  %v2381 = vpop.f32.mrb[0].mxu0
  %v2382 = vadd.f32 %v2207, %v2381
  %v2383 = vpop.f32.mrb[0].mxu0
  %2384 = vmatprep.mubr.f32.mxu0 0.0
  %v2385 = vand.u32 %v1424, 4294901760
  %2386 = vmatmul.mubr.f32.gmra.mrb[0].mxu0 %v2385
  %v2387 = vpop.f32.mrb[0].mxu0
  %v2388 = vadd.f32 %v2215, %v2387
  %v2389 = vpop.f32.mrb[0].mxu0
  %2390 = vdwg.mxu0
  %2391 = vmatprep.subr.mxu0 0.0
  %v2392 = vand.u32 %v1367, 4294901760
  %2393 = vmatpush1.msra.mxu0 %v2392
  %2394 = vmatprep.subr.mxu0 0.0
  %v2395 = vand.u32 %v1369, 4294901760
  %2396 = vmatpush1.msra.mxu0 %v2395
  %2397 = vmatprep.subr.mxu0 0.0
  %v2398 = vand.u32 %v1371, 4294901760
  %2399 = vmatpush1.msra.mxu0 %v2398
  %2400 = vmatprep.subr.mxu0 0.0
  %v2401 = vand.u32 %v1373, 4294901760
  %2402 = vmatpush1.msra.mxu0 %v2401
  %2403 = vmatprep.subr.mxu0 0.0
  %2404 = vmatpush1.msra.mxu0 0.0
  %2405 = vmatprep.subr.mxu0 0.0
  %2406 = vmatpush1.msra.mxu0 0.0
  %2407 = vmatprep.subr.mxu0 0.0
  %2408 = vmatpush1.msra.mxu0 0.0
  %2409 = vmatprep.subr.mxu0 0.0
  %2410 = vmatpush1.msra.mxu0 0.0
  %2411 = vmatprep.subr.mxu0 0.0
  %2412 = vmatpush1.msra.mxu0 0.0
  %2413 = vmatprep.subr.mxu0 0.0
  %2414 = vmatpush1.msra.mxu0 0.0
  %2415 = vmatprep.subr.mxu0 0.0
  %2416 = vmatpush1.msra.mxu0 0.0
  %2417 = vmatprep.subr.mxu0 0.0
  %2418 = vmatpush1.msra.mxu0 0.0
  %2419 = vmatprep.subr.mxu0 0.0
  %2420 = vmatpush1.msra.mxu0 0.0
  %2421 = vmatprep.subr.mxu0 0.0
  %2422 = vmatpush1.msra.mxu0 0.0
  %2423 = vmatprep.subr.mxu0 0.0
  %2424 = vmatpush1.msra.mxu0 0.0
  %2425 = vmatprep.subr.mxu0 0.0
  %2426 = vmatpush1.msra.mxu0 0.0
  %2427 = vmatprep.subr.mxu0 0.0
  %2428 = vmatpush1.msra.mxu0 0.0
  %2429 = vmatprep.subr.mxu0 0.0
  %2430 = vmatpush1.msra.mxu0 0.0
  %2431 = vmatprep.subr.mxu0 0.0
  %2432 = vmatpush1.msra.mxu0 0.0
  %2433 = vmatprep.subr.mxu0 0.0
  %2434 = vmatpush1.msra.mxu0 0.0
  %2435 = vmatprep.subr.mxu0 0.0
  %2436 = vmatpush1.msra.mxu0 0.0
  %2437 = vmatprep.subr.mxu0 0.0
  %2438 = vmatpush1.msra.mxu0 0.0
  %2439 = vmatprep.subr.mxu0 0.0
  %2440 = vmatpush1.msra.mxu0 0.0
  %2441 = vmatprep.subr.mxu0 0.0
  %2442 = vmatpush1.msra.mxu0 0.0
  %2443 = vmatprep.subr.mxu0 0.0
  %2444 = vmatpush1.msra.mxu0 0.0
  %2445 = vmatprep.subr.mxu0 0.0
  %2446 = vmatpush1.msra.mxu0 0.0
  %2447 = vmatprep.subr.mxu0 0.0
  %2448 = vmatpush1.msra.mxu0 0.0
  %2449 = vmatprep.subr.mxu0 0.0
  %2450 = vmatpush1.msra.mxu0 0.0
  %2451 = vmatprep.subr.mxu0 0.0
  %2452 = vmatpush1.msra.mxu0 0.0
  %2453 = vmatprep.subr.mxu0 0.0
  %2454 = vmatpush1.msra.mxu0 0.0
  %2455 = vmatprep.subr.mxu0 0.0
  %2456 = vmatpush1.msra.mxu0 0.0
  %2457 = vmatprep.subr.mxu0 0.0
  %2458 = vmatpush1.msra.mxu0 0.0
  %2459 = vmatprep.mubr.f32.mxu0 0.0
  %v2460 = vand.u32 %v1379, 4294901760
  %2461 = vmatmul.mubr.f32.gmra.mrb[0].mxu0 %v2460
  %v2462 = vpop.f32.mrb[0].mxu0
  %v2463 = vadd.f32 %v2298, %v2462
  %v2464 = vpop.f32.mrb[0].mxu0
  %2465 = vmatprep.mubr.f32.mxu0 0.0
  %v2466 = vand.u32 %v1382, 4294901760
  %2467 = vmatmul.mubr.f32.gmra.mrb[0].mxu0 %v2466
  %v2468 = vpop.f32.mrb[0].mxu0
  %v2469 = vadd.f32 %v2304, %v2468
  %v2470 = vpop.f32.mrb[0].mxu0
  %2471 = vmatprep.mubr.f32.mxu0 0.0
  %v2472 = vand.u32 %v1385, 4294901760
  %2473 = vmatmul.mubr.f32.gmra.mrb[0].mxu0 %v2472
  %v2474 = vpop.f32.mrb[0].mxu0
  %v2475 = vadd.f32 %v2310, %v2474
  %v2476 = vpop.f32.mrb[0].mxu0
  %2477 = vmatprep.mubr.f32.mxu0 0.0
  %v2478 = vand.u32 %v1388, 4294901760
  %2479 = vmatmul.mubr.f32.gmra.mrb[0].mxu0 %v2478
  %v2480 = vpop.f32.mrb[0].mxu0
  %v2481 = vadd.f32 %v2316, %v2480
  %v2482 = vpop.f32.mrb[0].mxu0
  %2483 = vmatprep.mubr.f32.mxu0 0.0
  %v2484 = vand.u32 %v1391, 4294901760
  %2485 = vmatmul.mubr.f32.gmra.mrb[0].mxu0 %v2484
  %v2486 = vpop.f32.mrb[0].mxu0
  %v2487 = vadd.f32 %v2322, %v2486
  %v2488 = vpop.f32.mrb[0].mxu0
  %2489 = vmatprep.mubr.f32.mxu0 0.0
  %v2490 = vand.u32 %v1394, 4294901760
  %2491 = vmatmul.mubr.f32.gmra.mrb[0].mxu0 %v2490
  %v2492 = vpop.f32.mrb[0].mxu0
  %v2493 = vadd.f32 %v2328, %v2492
  %v2494 = vpop.f32.mrb[0].mxu0
  %2495 = vmatprep.mubr.f32.mxu0 0.0
  %v2496 = vand.u32 %v1397, 4294901760
  %2497 = vmatmul.mubr.f32.gmra.mrb[0].mxu0 %v2496
  %v2498 = vpop.f32.mrb[0].mxu0
  %v2499 = vadd.f32 %v2334, %v2498
  %v2500 = vpop.f32.mrb[0].mxu0
  %2501 = vmatprep.mubr.f32.mxu0 0.0
  %v2502 = vand.u32 %v1400, 4294901760
  %2503 = vmatmul.mubr.f32.gmra.mrb[0].mxu0 %v2502
  %v2504 = vpop.f32.mrb[0].mxu0
  %v2505 = vadd.f32 %v2340, %v2504
  %v2506 = vpop.f32.mrb[0].mxu0
  %2507 = vmatprep.mubr.f32.mxu0 0.0
  %v2508 = vand.u32 %v1403, 4294901760
  %2509 = vmatmul.mubr.f32.gmra.mrb[0].mxu0 %v2508
  %v2510 = vpop.f32.mrb[0].mxu0
  %v2511 = vadd.f32 %v2346, %v2510
  %v2512 = vpop.f32.mrb[0].mxu0
  %2513 = vmatprep.mubr.f32.mxu0 0.0
  %v2514 = vand.u32 %v1406, 4294901760
  %2515 = vmatmul.mubr.f32.gmra.mrb[0].mxu0 %v2514
  %v2516 = vpop.f32.mrb[0].mxu0
  %v2517 = vadd.f32 %v2352, %v2516
  %v2518 = vpop.f32.mrb[0].mxu0
  %2519 = vmatprep.mubr.f32.mxu0 0.0
  %v2520 = vand.u32 %v1409, 4294901760
  %2521 = vmatmul.mubr.f32.gmra.mrb[0].mxu0 %v2520
  %v2522 = vpop.f32.mrb[0].mxu0
  %v2523 = vadd.f32 %v2358, %v2522
  %v2524 = vpop.f32.mrb[0].mxu0
  %2525 = vmatprep.mubr.f32.mxu0 0.0
  %v2526 = vand.u32 %v1412, 4294901760
  %2527 = vmatmul.mubr.f32.gmra.mrb[0].mxu0 %v2526
  %v2528 = vpop.f32.mrb[0].mxu0
  %v2529 = vadd.f32 %v2364, %v2528
  %v2530 = vpop.f32.mrb[0].mxu0
  %2531 = vmatprep.mubr.f32.mxu0 0.0
  %v2532 = vand.u32 %v1415, 4294901760
  %2533 = vmatmul.mubr.f32.gmra.mrb[0].mxu0 %v2532
  %v2534 = vpop.f32.mrb[0].mxu0
  %v2535 = vadd.f32 %v2370, %v2534
  %v2536 = vpop.f32.mrb[0].mxu0
  %2537 = vmatprep.mubr.f32.mxu0 0.0
  %v2538 = vand.u32 %v1418, 4294901760
  %2539 = vmatmul.mubr.f32.gmra.mrb[0].mxu0 %v2538
  %v2540 = vpop.f32.mrb[0].mxu0
  %v2541 = vadd.f32 %v2376, %v2540
  %v2542 = vpop.f32.mrb[0].mxu0
  %2543 = vmatprep.mubr.f32.mxu0 0.0
  %v2544 = vand.u32 %v1421, 4294901760
  %2545 = vmatmul.mubr.f32.gmra.mrb[0].mxu0 %v2544
  %v2546 = vpop.f32.mrb[0].mxu0
  %v2547 = vadd.f32 %v2382, %v2546
  %v2548 = vpop.f32.mrb[0].mxu0
  %2549 = vmatprep.mubr.f32.mxu0 0.0
  %v2550 = vand.u32 %v1424, 4294901760
  %2551 = vmatmul.mubr.f32.gmra.mrb[0].mxu0 %v2550
  %v2552 = vpop.f32.mrb[0].mxu0
  %v2553 = vadd.f32 %v2388, %v2552
  %v2554 = vpop.f32.mrb[0].mxu0
  %2555 = vdwg.mxu0
  %v2556 = vsub.f32 %v2511, %v2463
  %v2557 = vsub.f32 %v2517, %v2469
  %v2558 = vsub.f32 %v2523, %v2475
  %v2559 = vsub.f32 %v2529, %v2481
  %v2560 = vsub.f32 %v2535, %v2487
  %v2561 = vsub.f32 %v2541, %v2493
  %v2562 = vsub.f32 %v2547, %v2499
  %v2563 = vsub.f32 %v2553, %v2505
  %v2564 = vxor.u32 %v2556, 2147483648
  %v2565 = vxor.u32 %v2557, 2147483648
  %v2566 = vxor.u32 %v2558, 2147483648
  %v2567 = vxor.u32 %v2559, 2147483648
  %v2568 = vxor.u32 %v2560, 2147483648
  %v2569 = vxor.u32 %v2561, 2147483648
  %v2570 = vxor.u32 %v2562, 2147483648
  %v2571 = vxor.u32 %v2563, 2147483648
  %v2572 = vmul.f32 %v2564, 1.442695
  %v2573 = vpow.pop %v2572
  %v2574 = vmul.f32 %v2565, 1.442695
  %v2575 = vpow.pop %v2574
  %v2576 = vmul.f32 %v2566, 1.442695
  %v2577 = vpow.pop %v2576
  %v2578 = vmul.f32 %v2567, 1.442695
  %v2579 = vpow.pop %v2578
  %v2580 = vmul.f32 %v2568, 1.442695
  %v2581 = vpow.pop %v2580
  %v2582 = vmul.f32 %v2569, 1.442695
  %v2583 = vpow.pop %v2582
  %v2584 = vmul.f32 %v2570, 1.442695
  %v2585 = vpow.pop %v2584
  %v2586 = vmul.f32 %v2571, 1.442695
  %v2587 = vpow.pop %v2586
  %v2588 = vadd.f32 %v2573, 1.0
  %v2589 = vadd.f32 %v2575, 1.0
  %v2590 = vadd.f32 %v2577, 1.0
  %v2591 = vadd.f32 %v2579, 1.0
  %v2592 = vadd.f32 %v2581, 1.0
  %v2593 = vadd.f32 %v2583, 1.0
  %v2594 = vadd.f32 %v2585, 1.0
  %v2595 = vadd.f32 %v2587, 1.0
  %v2596 = vrcp.pop %v2588
  %v2597 = vmul.f32 1.0, %v2596
  %v2598 = vrcp.pop %v2589
  %v2599 = vmul.f32 1.0, %v2598
  %v2600 = vrcp.pop %v2590
  %v2601 = vmul.f32 1.0, %v2600
  %v2602 = vrcp.pop %v2591
  %v2603 = vmul.f32 1.0, %v2602
  %v2604 = vrcp.pop %v2592
  %v2605 = vmul.f32 1.0, %v2604
  %v2606 = vrcp.pop %v2593
  %v2607 = vmul.f32 1.0, %v2606
  %v2608 = vrcp.pop %v2594
  %v2609 = vmul.f32 1.0, %v2608
  %v2610 = vrcp.pop %v2595
  %v2611 = vmul.f32 1.0, %v2610
  %v2612 = vmul.f32 %v2597, %v2605
  %v2613 = vmul.f32 %v2599, %v2607
  %v2614 = vmul.f32 %v2601, %v2609
  %v2615 = vmul.f32 %v2603, %v2611
  %2617 = vrot.lane.b32.xlu0 %v2613, 1
  %v2618 = vpop.permute.xlu0 %2617
  %2621 = vrot.lane.b32.xlu0 %v2614, 2
  %v2622 = vpop.permute.xlu0 %2621
  %2625 = vrot.lane.b32.xlu0 %v2615, 3
  %v2626 = vpop.permute.xlu0 %2625
  %vm2628 = vcmask 7168
  %v2629 = vsel %vm2628, %v2612, %v2618
  %vm2630 = vcmask 15360
  %v2631 = vsel %vm2630, %v2629, %v2622
  %vm2632 = vcmask 23552
  %v2633 = vsel %vm2632, %v2631, %v2626
  %v2634 = vld [vmem:[%s1 + $0x60] sm:$0x1]
  %vm2635 = vcmask 31744
  %2636 = vst.msk [vmem:[%s3] sm:$0xff] %vm2635, %v2633
  %v2637 = vlaneseq
  %v2638 = vshrl.u32 %v2637, 7
  %v2639 = vsub.s32 0, %v2638
  %v2640 = vrot.slane %v2634, %v2639
  %v2641 = vmul.f32 %v2633, %v2640
  %v2642 = vsel %vm2635, %v2641, 0.0
  %2643 = vadd.xlane.f32.xlu0 %v2642
  %v2644 = vpop.xlane.xlu0 %2643
  %2645 = vst.msk [vmem:[%s2] sm:$0xff] %vm2628, %v2644
  // Predicated region
  $region10: #{forward.1} parent=0 // pred_check
    _
  $region11: #{forward.1} parent=0 // pred_check_branch
    %2647 = sbr.rel (0) target = $region13
  $region12: #{forward.1} parent=0 // pred_region
    _
  $region13: #{forward.1} parent=0 // pred_fallthru
    _
  // Predicated region
  $region14: #{forward.1} parent=0 // pred_check
    _
  $region15: #{forward.1} parent=0 // pred_check_branch
    %2649 = sbr.rel (0) target = $region17
  $region16: #{forward.1} parent=0 // pred_region
    _
  $region17: #{forward.1} parent=0 // pred_fallthru
    _
  // Predicated region
  $region18: #{forward.1} parent=0 // pred_check
    _
  $region19: #{forward.1} parent=0 // pred_check_branch
    %2651 = sbr.rel (0) target = $region21
  $region20: #{forward.1} parent=0 // pred_region
    _
  $region21: #{forward.1} parent=0 // pred_fallthru
    _
  // Predicated region
  $region22: #{forward.1} parent=0 // pred_check
    _
  $region23: #{forward.1} parent=0 // pred_check_branch
    %2653 = sbr.rel (0) target = $region25
  $region24: #{forward.1} parent=0 // pred_region
    _
  $region25: #{forward.1} parent=0 // pred_fallthru
    _

</llo_original>
